<compile_context>
chip_gen: v7x
topology: tpu7x:2x2x1
jax: 0.10.0
libtpu: 0.0.40
codegen_flags: <defaults>
</compile_context>

<pallas_src>
import functools

import jax
import jax.numpy as jnp
from jax import lax
from jax.experimental import pallas as pl
from jax.experimental.pallas import tpu as pltpu


def _feature_prop_kernel(ps_ref, bdst_ref, xskip_ref,
                         posT_ref, bsrc_ref, xaug_ref,
                         w1a_ref, w1b_ref, b1_ref, shift_ref,
                         out_ref, *, k, index_bits):
    # ps:    (TM, 3)       target positions for this block
    # bdst:  (TM, 1)       target batch ids
    # xskip: (TM, Cs)      skip features (bf16)
    # posT:  (3, Nsrc)     source positions, pre-transposed
    # bsrc:  (1, Nsrc)     source batch ids
    # xaug:  (Nsrc, C+1)   source features with a trailing ones column (f32)
    # w1a:   (C,  Hp)      Linear weight (interp part, BN-scale folded, bf16)
    # w1b:   (Cs, Hp)      Linear weight (skip part,   BN-scale folded, bf16)
    # b1:    (1, Hp)       Linear bias   (BN-scale folded, f32)
    # shift: (1, Hp)       BN shift (f32)
    ps = ps_ref[...]
    posT = posT_ref[...]

    # --- squared distances: 3 broadcast subtract/FMA passes on the VPU -----
    d0 = ps[:, 0:1] - posT[0:1, :]
    d1 = ps[:, 1:2] - posT[1:2, :]
    d2 = ps[:, 2:3] - posT[2:3, :]
    d = d0 * d0 + d1 * d1 + d2 * d2                               # (TM, Nsrc)

    # mask out cross-batch pairs
    same = bdst_ref[...] == bsrc_ref[...]                         # (TM, Nsrc)
    BIG = jnp.float32(1e30)
    d = jnp.where(same, d, BIG)
    # TODO(synk): if a target has fewer than k same-batch sources this (like
    # the previous version) falls back to BIG-distance neighbors with ~1e-30
    # weight instead of returning fewer neighbors like torch_cluster.knn.

    n_src = d.shape[1]
    col = lax.broadcasted_iota(jnp.int32, d.shape, 1)

    # --- top-k with ONE min reduction per selected neighbor ----------------
    # d >= 0, so its float32 bit pattern is monotone when viewed as int32.
    # Pack the column index into the low mantissa bits -> a single int32 min
    # gives both the (near-)smallest distance and its column; ties / near-
    # ties (within 2^-(23-index_bits) relative) break toward the lowest col.
    idx_mask = (1 << index_bits) - 1
    keep = jnp.int32(~idx_mask)
    key = (pltpu.bitcast(d, jnp.int32) & keep) | col              # (TM, Nsrc)
    KEY_BIG = jnp.int32(0x7F7FFFFF)                               # bits(FLT_MAX)

    sel = jnp.zeros_like(d)
    for _ in range(k):
        kmin = jnp.min(key, axis=1, keepdims=True)                # 1 XLU reduce
        onehot = col == (kmin & jnp.int32(idx_mask))
        sel = jnp.where(onehot, 1.0, sel)
        key = jnp.where(onehot, KEY_BIG, key)

    # --- inverse squared-distance weights (EUP approx reciprocal) ----------
    w = sel * pl.reciprocal(jnp.maximum(d, 1e-16), approx=True)   # (TM, Nsrc)

    # numerator AND denominator from one MXU matmul (ones column in xaug)
    num_aug = jnp.dot(w, xaug_ref[...],
                      preferred_element_type=jnp.float32)         # (TM, C+1)
    c_feat = num_aug.shape[1] - 1
    den = num_aug[:, c_feat:c_feat + 1]                           # (TM, 1)
    interp = num_aug[:, :c_feat] * pl.reciprocal(den, approx=True)

    # --- MLP: split matmul (no lane concat), bf16 operands, f32 accumulate -
    h = jnp.dot(interp.astype(jnp.bfloat16), w1a_ref[...],
                preferred_element_type=jnp.float32)
    h = h + jnp.dot(xskip_ref[...], w1b_ref[...],
                    preferred_element_type=jnp.float32)
    h = jnp.maximum(h + b1_ref[...], 0.0)                         # ReLU
    out_ref[...] = h + shift_ref[...]                             # BN shift


def feature_prop(x, pos, batch, x_skip, pos_skip, batch_skip, params,
                 *, k=3, tm=128):
    """Returns (nn(cat(knn_interpolate(x,...), x_skip)), pos_skip, batch_skip)."""
    n_dst = pos_skip.shape[0]
    n_src, c = x.shape
    c_skip = x_skip.shape[1]
    hidden = params["w1"].shape[1]

    # --- target-side padding so the grid tiles evenly (tail handling) ------
    n_pad = ((n_dst + tm - 1) // tm) * tm
    pad = n_pad - n_dst
    pos_skip_p = jnp.pad(pos_skip.astype(jnp.float32), ((0, pad), (0, 0)))
    x_skip_p = jnp.pad(x_skip, ((0, pad), (0, 0))).astype(jnp.bfloat16)
    bdst = jnp.pad(batch_skip.astype(jnp.int32), (0, pad))[:, None]

    # --- source-side preprocessing ------------------------------------------
    posT = jnp.transpose(pos.astype(jnp.float32))                  # (3, Nsrc)
    bsrc = batch.astype(jnp.int32)[None, :]                        # (1, Nsrc)
    # ones column -> the interpolation denominator falls out of the matmul
    x_aug = jnp.concatenate(
        [x.astype(jnp.float32), jnp.ones((n_src, 1), jnp.float32)], axis=1)

    # --- MLP params: fold BN scale (scale > 0 here, ReLU commutes), pad to a
    #     lane-dense hidden width, split the weight for the split matmul -----
    h_pad = max(128, ((hidden + 127) // 128) * 128)
    hp = h_pad - hidden
    scale = params["bn_scale"]                                     # (1, hidden) > 0
    shift = params["bn_shift"]
    w1s = params["w1"] * scale
    b1s = params["b1"] * scale
    w1a = jnp.pad(w1s[:c, :], ((0, 0), (0, hp))).astype(jnp.bfloat16)
    w1b = jnp.pad(w1s[c:, :], ((0, 0), (0, hp))).astype(jnp.bfloat16)
    b1p = jnp.pad(b1s, ((0, 0), (0, hp))).astype(jnp.float32)
    shiftp = jnp.pad(shift, ((0, 0), (0, hp))).astype(jnp.float32)

    index_bits = max(1, (n_src - 1).bit_length())

    grid = (n_pad // tm,)
    # TODO(synk): for point clouds whose (TM, Nsrc) temporaries exceed VMEM
    # (v7x: 64 MiB/TC) add a second "arbitrary" grid axis over source blocks
    # with a streaming/online top-k instead of keeping Nsrc fully resident.
    out = pl.pallas_call(
        functools.partial(_feature_prop_kernel, k=k, index_bits=index_bits),
        out_shape=jax.ShapeDtypeStruct((n_pad, h_pad), jnp.float32),
        grid_spec=pltpu.PrefetchScalarGridSpec(
            num_scalar_prefetch=0,
            grid=grid,
            in_specs=[
                pl.BlockSpec((tm, 3), lambda i: (i, 0)),             # pos_skip
                pl.BlockSpec((tm, 1), lambda i: (i, 0)),             # batch_skip
                pl.BlockSpec((tm, c_skip), lambda i: (i, 0)),        # x_skip
                pl.BlockSpec((3, n_src), lambda i: (0, 0)),          # posT
                pl.BlockSpec((1, n_src), lambda i: (0, 0)),          # batch_src
                pl.BlockSpec((n_src, c + 1), lambda i: (0, 0)),      # x_aug
                pl.BlockSpec((c, h_pad), lambda i: (0, 0)),          # w1a
                pl.BlockSpec((c_skip, h_pad), lambda i: (0, 0)),     # w1b
                pl.BlockSpec((1, h_pad), lambda i: (0, 0)),          # b1
                pl.BlockSpec((1, h_pad), lambda i: (0, 0)),          # shift
            ],
            out_specs=pl.BlockSpec((tm, h_pad), lambda i: (i, 0)),
        ),
        compiler_params=pltpu.CompilerParams(
            dimension_semantics=("parallel",)),
    )(pos_skip_p, bdst, x_skip_p, posT, bsrc, x_aug, w1a, w1b, b1p, shiftp)

    return out[:n_dst, :hidden], pos_skip, batch_skip


def make_params(c_in, hidden, key):
    """Deterministic params for self.nn = Seq(Lin(c_in, hidden), ReLU, BN(hidden))."""
    k1, k2 = jax.random.split(key)
    w1 = jax.random.normal(k1, (c_in, hidden), jnp.float32) * 0.1
    b1 = jax.random.normal(k2, (1, hidden), jnp.float32) * 0.01
    # BatchNorm1d eval-mode, folded: y = (x - mean)/sqrt(var+eps)*gamma + beta
    i = jnp.arange(hidden, dtype=jnp.float32)
    gamma = 1.0 + 0.01 * i                 # > 0  -> scale > 0 (fold is valid)
    beta = 0.02 * i
    running_mean = 0.05 * jnp.sin(i)
    running_var = 1.0 + 0.03 * i
    eps = 1e-5
    scale = gamma / jnp.sqrt(running_var + eps)
    shift = beta - running_mean * scale
    return {
        "w1": w1,
        "b1": b1,
        "bn_scale": scale[None, :],
        "bn_shift": shift[None, :],
    }


if __name__ == "__main__":
    key = jax.random.PRNGKey(0)
    k_pos, k_poss, k_x, k_xs, k_par = jax.random.split(key, 5)

    # small shapes: 2 batches, 64 source points, 200 target (skip) points
    # (200 is deliberately not a multiple of tm=128 to exercise tail padding)
    N_SRC, N_DST = 64, 200
    C, C_SKIP, HIDDEN = 32, 16, 64
    K = 3

    pos = jax.random.normal(k_pos, (N_SRC, 3), jnp.float32)
    pos_skip = jax.random.normal(k_poss, (N_DST, 3), jnp.float32)
    x = jax.random.normal(k_x, (N_SRC, C), jnp.float32)
    x_skip = jax.random.normal(k_xs, (N_DST, C_SKIP), jnp.float32)
    batch = jnp.concatenate(
        [jnp.zeros(N_SRC // 2, jnp.int32), jnp.ones(N_SRC // 2, jnp.int32)])
    batch_skip = jnp.concatenate(
        [jnp.zeros(N_DST // 2, jnp.int32), jnp.ones(N_DST // 2, jnp.int32)])

    params = make_params(C + C_SKIP, HIDDEN, k_par)

    out, pos_out, batch_out = feature_prop(
        x, pos, batch, x_skip, pos_skip, batch_skip, params, k=K, tm=128)
    jax.block_until_ready(out)

    assert out.shape == (N_DST, HIDDEN)
    assert pos_out.shape == pos_skip.shape
    assert batch_out.shape == batch_skip.shape
    assert bool(jnp.all(jnp.isfinite(out)))
    print("KERNEL_OK")
</pallas_src>

<mosaic_0001>
module attributes {stable_mosaic.version = 11 : i64} {
  func.func @_feature_prop_kernel(%arg0: i32, %arg1: memref<128x3xf32, #tpu.memory_space<vmem>>, %arg2: memref<128x1xi32, #tpu.memory_space<vmem>>, %arg3: memref<128x16xbf16, #tpu.memory_space<vmem>>, %arg4: memref<3x64xf32, #tpu.memory_space<vmem>>, %arg5: memref<1x64xi32, #tpu.memory_space<vmem>>, %arg6: memref<64x33xf32, #tpu.memory_space<vmem>>, %arg7: memref<32x128xbf16, #tpu.memory_space<vmem>>, %arg8: memref<16x128xbf16, #tpu.memory_space<vmem>>, %arg9: memref<1x128xf32, #tpu.memory_space<vmem>>, %arg10: memref<1x128xf32, #tpu.memory_space<vmem>>, %arg11: memref<128x128xf32, #tpu.memory_space<vmem>>) attributes {dimension_semantics = [#tpu.dimension_semantics<parallel>], iteration_bounds = array<i64: 2>, scalar_prefetch = 0 : i64, scratch_operands = 0 : i64, tpu.core_type = #tpu.core_type<tc>, window_params = [{transform_indices = @transform_0, window_bounds = array<i64: 128, 3>}, {transform_indices = @transform_1, window_bounds = array<i64: 128, 1>}, {transform_indices = @transform_2, window_bounds = array<i64: 128, 16>}, {pipeline_mode = #tpu.pipeline_mode<synchronous>, transform_indices = @transform_3, window_bounds = array<i64: 3, 64>}, {pipeline_mode = #tpu.pipeline_mode<synchronous>, transform_indices = @transform_4, window_bounds = array<i64: 1, 64>}, {pipeline_mode = #tpu.pipeline_mode<synchronous>, transform_indices = @transform_5, window_bounds = array<i64: 64, 33>}, {pipeline_mode = #tpu.pipeline_mode<synchronous>, transform_indices = @transform_6, window_bounds = array<i64: 32, 128>}, {pipeline_mode = #tpu.pipeline_mode<synchronous>, transform_indices = @transform_7, window_bounds = array<i64: 16, 128>}, {pipeline_mode = #tpu.pipeline_mode<synchronous>, transform_indices = @transform_8, window_bounds = array<i64: 1, 128>}, {pipeline_mode = #tpu.pipeline_mode<synchronous>, transform_indices = @transform_9, window_bounds = array<i64: 1, 128>}, {transform_indices = @transform_10, window_bounds = array<i64: 128, 128>}]} {
    %c0 = arith.constant 0 : index
    %c0_0 = arith.constant 0 : index
    %0 = vector.load %arg1[%c0, %c0_0] : memref<128x3xf32, #tpu.memory_space<vmem>>, vector<128x3xf32>
    %c0_1 = arith.constant 0 : index
    %c0_2 = arith.constant 0 : index
    %1 = vector.load %arg4[%c0_1, %c0_2] : memref<3x64xf32, #tpu.memory_space<vmem>>, vector<3x64xf32>
    %2 = vector.extract_strided_slice %0 {offsets = [0, 0], sizes = [128, 1], strides = [1, 1]} : vector<128x3xf32> to vector<128x1xf32>
    %3 = vector.extract_strided_slice %1 {offsets = [0, 0], sizes = [1, 64], strides = [1, 1]} : vector<3x64xf32> to vector<1x64xf32>
    %4 = vector.broadcast %2 : vector<128x1xf32> to vector<128x64xf32>
    %5 = vector.broadcast %3 : vector<1x64xf32> to vector<128x64xf32>
    %6 = arith.subf %4, %5 : vector<128x64xf32>
    %7 = vector.extract_strided_slice %0 {offsets = [0, 1], sizes = [128, 1], strides = [1, 1]} : vector<128x3xf32> to vector<128x1xf32>
    %8 = vector.extract_strided_slice %1 {offsets = [1, 0], sizes = [1, 64], strides = [1, 1]} : vector<3x64xf32> to vector<1x64xf32>
    %9 = vector.broadcast %7 : vector<128x1xf32> to vector<128x64xf32>
    %10 = vector.broadcast %8 : vector<1x64xf32> to vector<128x64xf32>
    %11 = arith.subf %9, %10 : vector<128x64xf32>
    %12 = vector.extract_strided_slice %0 {offsets = [0, 2], sizes = [128, 1], strides = [1, 1]} : vector<128x3xf32> to vector<128x1xf32>
    %13 = vector.extract_strided_slice %1 {offsets = [2, 0], sizes = [1, 64], strides = [1, 1]} : vector<3x64xf32> to vector<1x64xf32>
    %14 = vector.broadcast %12 : vector<128x1xf32> to vector<128x64xf32>
    %15 = vector.broadcast %13 : vector<1x64xf32> to vector<128x64xf32>
    %16 = arith.subf %14, %15 : vector<128x64xf32>
    %17 = arith.mulf %6, %6 : vector<128x64xf32>
    %18 = arith.mulf %11, %11 : vector<128x64xf32>
    %19 = arith.addf %17, %18 : vector<128x64xf32>
    %20 = arith.mulf %16, %16 : vector<128x64xf32>
    %21 = arith.addf %19, %20 : vector<128x64xf32>
    %c0_3 = arith.constant 0 : index
    %c0_4 = arith.constant 0 : index
    %22 = vector.load %arg2[%c0_3, %c0_4] : memref<128x1xi32, #tpu.memory_space<vmem>>, vector<128x1xi32>
    %c0_5 = arith.constant 0 : index
    %c0_6 = arith.constant 0 : index
    %23 = vector.load %arg5[%c0_5, %c0_6] : memref<1x64xi32, #tpu.memory_space<vmem>>, vector<1x64xi32>
    %24 = vector.broadcast %22 : vector<128x1xi32> to vector<128x64xi32>
    %25 = vector.broadcast %23 : vector<1x64xi32> to vector<128x64xi32>
    %26 = arith.cmpi eq, %24, %25 : vector<128x64xi32>
    %cst = arith.constant 1.000000e+30 : f32
    %27 = vector.broadcast %cst : f32 to vector<128x64xf32>
    %28 = arith.select %26, %21, %27 : vector<128x64xi1>, vector<128x64xf32>
    %29 = tpu.iota {dimensions = array<i32: 1>} : vector<128x64xi32>
    %30 = tpu.bitcast %28 : vector<128x64xf32> -> vector<128x64xi32>
    %c-64_i32 = arith.constant -64 : i32
    %31 = vector.broadcast %c-64_i32 : i32 to vector<128x64xi32>
    %32 = arith.andi %30, %31 : vector<128x64xi32>
    %33 = arith.ori %32, %29 : vector<128x64xi32>
    %cst_7 = arith.constant 0.000000e+00 : f32
    %34 = vector.broadcast %cst_7 : f32 to vector<128x64xf32>
    %cst_8 = arith.constant dense<2147483647> : vector<128xi32>
    %35 = vector.multi_reduction <minsi>, %33, %cst_8 [1] : vector<128x64xi32> to vector<128xi32>
    %36 = vector.shape_cast %35 : vector<128xi32> to vector<128x1xi32>
    %c63_i32 = arith.constant 63 : i32
    %37 = vector.broadcast %c63_i32 : i32 to vector<128x1xi32>
    %38 = arith.andi %36, %37 : vector<128x1xi32>
    %39 = vector.broadcast %38 : vector<128x1xi32> to vector<128x64xi32>
    %40 = arith.cmpi eq, %29, %39 : vector<128x64xi32>
    %cst_9 = arith.constant 1.000000e+00 : f32
    %41 = vector.broadcast %cst_9 : f32 to vector<128x64xf32>
    %42 = arith.select %40, %41, %34 : vector<128x64xi1>, vector<128x64xf32>
    %c2139095039_i32 = arith.constant 2139095039 : i32
    %43 = vector.broadcast %c2139095039_i32 : i32 to vector<128x64xi32>
    %44 = arith.select %40, %43, %33 : vector<128x64xi1>, vector<128x64xi32>
    %cst_10 = arith.constant dense<2147483647> : vector<128xi32>
    %45 = vector.multi_reduction <minsi>, %44, %cst_10 [1] : vector<128x64xi32> to vector<128xi32>
    %46 = vector.shape_cast %45 : vector<128xi32> to vector<128x1xi32>
    %c63_i32_11 = arith.constant 63 : i32
    %47 = vector.broadcast %c63_i32_11 : i32 to vector<128x1xi32>
    %48 = arith.andi %46, %47 : vector<128x1xi32>
    %49 = vector.broadcast %48 : vector<128x1xi32> to vector<128x64xi32>
    %50 = arith.cmpi eq, %29, %49 : vector<128x64xi32>
    %cst_12 = arith.constant 1.000000e+00 : f32
    %51 = vector.broadcast %cst_12 : f32 to vector<128x64xf32>
    %52 = arith.select %50, %51, %42 : vector<128x64xi1>, vector<128x64xf32>
    %c2139095039_i32_13 = arith.constant 2139095039 : i32
    %53 = vector.broadcast %c2139095039_i32_13 : i32 to vector<128x64xi32>
    %54 = arith.select %50, %53, %44 : vector<128x64xi1>, vector<128x64xi32>
    %cst_14 = arith.constant dense<2147483647> : vector<128xi32>
    %55 = vector.multi_reduction <minsi>, %54, %cst_14 [1] : vector<128x64xi32> to vector<128xi32>
    %56 = vector.shape_cast %55 : vector<128xi32> to vector<128x1xi32>
    %c63_i32_15 = arith.constant 63 : i32
    %57 = vector.broadcast %c63_i32_15 : i32 to vector<128x1xi32>
    %58 = arith.andi %56, %57 : vector<128x1xi32>
    %59 = vector.broadcast %58 : vector<128x1xi32> to vector<128x64xi32>
    %60 = arith.cmpi eq, %29, %59 : vector<128x64xi32>
    %cst_16 = arith.constant 1.000000e+00 : f32
    %61 = vector.broadcast %cst_16 : f32 to vector<128x64xf32>
    %62 = arith.select %60, %61, %52 : vector<128x64xi1>, vector<128x64xf32>
    %cst_17 = arith.constant 1.000000e-16 : f32
    %63 = vector.broadcast %cst_17 : f32 to vector<128x64xf32>
    %64 = arith.maximumf %28, %63 : vector<128x64xf32>
    %65 = tpu.reciprocal %64 {approx = true} : vector<128x64xf32> -> vector<128x64xf32>
    %66 = arith.mulf %62, %65 : vector<128x64xf32>
    %c0_18 = arith.constant 0 : index
    %c0_19 = arith.constant 0 : index
    %67 = vector.load %arg6[%c0_18, %c0_19] : memref<64x33xf32, #tpu.memory_space<vmem>>, vector<64x33xf32>
    %cst_20 = arith.constant dense<0.000000e+00> : vector<128x33xf32>
    %68 = tpu.matmul %66, %67, %cst_20 {dimension_numbers = #tpu.dot_dimension_numbers<[1], [0], [0], [1], [0, 0, 1, 1], [], []>} : vector<128x64xf32>, vector<64x33xf32>, vector<128x33xf32> -> vector<128x33xf32>
    %69 = vector.extract_strided_slice %68 {offsets = [0, 32], sizes = [128, 1], strides = [1, 1]} : vector<128x33xf32> to vector<128x1xf32>
    %70 = vector.extract_strided_slice %68 {offsets = [0, 0], sizes = [128, 32], strides = [1, 1]} : vector<128x33xf32> to vector<128x32xf32>
    %71 = tpu.reciprocal %69 {approx = true} : vector<128x1xf32> -> vector<128x1xf32>
    %72 = vector.broadcast %71 : vector<128x1xf32> to vector<128x32xf32>
    %73 = arith.mulf %70, %72 : vector<128x32xf32>
    %74 = arith.truncf %73 : vector<128x32xf32> to vector<128x32xbf16>
    %c0_21 = arith.constant 0 : index
    %c0_22 = arith.constant 0 : index
    %75 = vector.load %arg7[%c0_21, %c0_22] : memref<32x128xbf16, #tpu.memory_space<vmem>>, vector<32x128xbf16>
    %cst_23 = arith.constant dense<0.000000e+00> : vector<128x128xf32>
    %76 = tpu.matmul %74, %75, %cst_23 {dimension_numbers = #tpu.dot_dimension_numbers<[1], [0], [0], [1], [0, 0, 1, 1], [], []>} : vector<128x32xbf16>, vector<32x128xbf16>, vector<128x128xf32> -> vector<128x128xf32>
    %c0_24 = arith.constant 0 : index
    %c0_25 = arith.constant 0 : index
    %77 = vector.load %arg3[%c0_24, %c0_25] : memref<128x16xbf16, #tpu.memory_space<vmem>>, vector<128x16xbf16>
    %c0_26 = arith.constant 0 : index
    %c0_27 = arith.constant 0 : index
    %78 = vector.load %arg8[%c0_26, %c0_27] : memref<16x128xbf16, #tpu.memory_space<vmem>>, vector<16x128xbf16>
    %cst_28 = arith.constant dense<0.000000e+00> : vector<128x128xf32>
    %79 = tpu.matmul %77, %78, %cst_28 {dimension_numbers = #tpu.dot_dimension_numbers<[1], [0], [0], [1], [0, 0, 1, 1], [], []>} : vector<128x16xbf16>, vector<16x128xbf16>, vector<128x128xf32> -> vector<128x128xf32>
    %80 = arith.addf %76, %79 : vector<128x128xf32>
    %c0_29 = arith.constant 0 : index
    %c0_30 = arith.constant 0 : index
    %81 = vector.load %arg9[%c0_29, %c0_30] : memref<1x128xf32, #tpu.memory_space<vmem>>, vector<1x128xf32>
    %82 = vector.broadcast %81 : vector<1x128xf32> to vector<128x128xf32>
    %83 = arith.addf %80, %82 : vector<128x128xf32>
    %cst_31 = arith.constant 0.000000e+00 : f32
    %84 = vector.broadcast %cst_31 : f32 to vector<128x128xf32>
    %85 = arith.maximumf %83, %84 : vector<128x128xf32>
    %c0_32 = arith.constant 0 : index
    %c0_33 = arith.constant 0 : index
    %86 = vector.load %arg10[%c0_32, %c0_33] : memref<1x128xf32, #tpu.memory_space<vmem>>, vector<1x128xf32>
    %87 = vector.broadcast %86 : vector<1x128xf32> to vector<128x128xf32>
    %88 = arith.addf %85, %87 : vector<128x128xf32>
    %c0_34 = arith.constant 0 : index
    %c0_35 = arith.constant 0 : index
    %89 = vector.load %arg11[%c0_34, %c0_35] : memref<128x128xf32, #tpu.memory_space<vmem>>, vector<128x128xf32>
    tpu.vector_store %arg11[%c0_34, %c0_35], %88 {strides = array<i32>} : memref<128x128xf32, #tpu.memory_space<vmem>>, vector<128x128xf32>,
    return
  }
  func.func @transform_0(%arg0: i32) -> (i32, i32) {
    %c0_i32 = arith.constant 0 : i32
    %c0_i32_0 = arith.constant 0 : i32
    return %arg0, %c0_i32 : i32, i32
  }
  func.func @transform_1(%arg0: i32) -> (i32, i32) {
    %c0_i32 = arith.constant 0 : i32
    %c0_i32_0 = arith.constant 0 : i32
    return %arg0, %c0_i32 : i32, i32
  }
  func.func @transform_2(%arg0: i32) -> (i32, i32) {
    %c0_i32 = arith.constant 0 : i32
    %c0_i32_0 = arith.constant 0 : i32
    return %arg0, %c0_i32 : i32, i32
  }
  func.func @transform_3(%arg0: i32) -> (i32, i32) {
    %c0_i32 = arith.constant 0 : i32
    %c0_i32_0 = arith.constant 0 : i32
    %c0_i32_1 = arith.constant 0 : i32
    return %c0_i32, %c0_i32_0 : i32, i32
  }
  func.func @transform_4(%arg0: i32) -> (i32, i32) {
    %c0_i32 = arith.constant 0 : i32
    %c0_i32_0 = arith.constant 0 : i32
    %c0_i32_1 = arith.constant 0 : i32
    return %c0_i32, %c0_i32_0 : i32, i32
  }
  func.func @transform_5(%arg0: i32) -> (i32, i32) {
    %c0_i32 = arith.constant 0 : i32
    %c0_i32_0 = arith.constant 0 : i32
    %c0_i32_1 = arith.constant 0 : i32
    return %c0_i32, %c0_i32_0 : i32, i32
  }
  func.func @transform_6(%arg0: i32) -> (i32, i32) {
    %c0_i32 = arith.constant 0 : i32
    %c0_i32_0 = arith.constant 0 : i32
    %c0_i32_1 = arith.constant 0 : i32
    return %c0_i32, %c0_i32_0 : i32, i32
  }
  func.func @transform_7(%arg0: i32) -> (i32, i32) {
    %c0_i32 = arith.constant 0 : i32
    %c0_i32_0 = arith.constant 0 : i32
    %c0_i32_1 = arith.constant 0 : i32
    return %c0_i32, %c0_i32_0 : i32, i32
  }
  func.func @transform_8(%arg0: i32) -> (i32, i32) {
    %c0_i32 = arith.constant 0 : i32
    %c0_i32_0 = arith.constant 0 : i32
    %c0_i32_1 = arith.constant 0 : i32
    return %c0_i32, %c0_i32_0 : i32, i32
  }
  func.func @transform_9(%arg0: i32) -> (i32, i32) {
    %c0_i32 = arith.constant 0 : i32
    %c0_i32_0 = arith.constant 0 : i32
    %c0_i32_1 = arith.constant 0 : i32
    return %c0_i32, %c0_i32_0 : i32, i32
  }
  func.func @transform_10(%arg0: i32) -> (i32, i32) {
    %c0_i32 = arith.constant 0 : i32
    %c0_i32_0 = arith.constant 0 : i32
    return %arg0, %c0_i32 : i32, i32
  }
}

</mosaic_0001>

<llo_original>
// kernel: tpu_custom_call.1
$region0: #{tpu_custom_call.1}
  #allocation0 [shape = 'u32[]', space=smem, size = 0x4, offset = 0x4, fixed_abs, tag = 'smem constant byte address 0x4 - core index']
  #allocation1 [shape = 'u32[144,128]{1,0:T(1,128)}', space=vmem, size = 0x12000, scoped, tag = 'internal scratch']
  %s0 = inlined_call_operand.vmem [shape: f32[256,3], index: 0, kind: input, shape index: {}]
  %s1 = inlined_call_operand.vmem [shape: s32[256,1], index: 1, kind: input, shape index: {}]
  %s2 = inlined_call_operand.vmem [shape: bf16[256,16], index: 2, kind: input, shape index: {}]
  %s3 = inlined_call_operand.vmem [shape: f32[3,64], index: 3, kind: input, shape index: {}]
  %s4 = inlined_call_operand.vmem [shape: s32[1,64], index: 4, kind: input, shape index: {}]
  %s5 = inlined_call_operand.vmem [shape: f32[64,33], index: 5, kind: input, shape index: {}]
  %s6 = inlined_call_operand.vmem [shape: bf16[32,128], index: 6, kind: input, shape index: {}]
  %s7 = inlined_call_operand.vmem [shape: bf16[16,128], index: 7, kind: input, shape index: {}]
  %s8 = inlined_call_operand.vmem [shape: f32[1,128], index: 8, kind: input, shape index: {}]
  %s9 = inlined_call_operand.vmem [shape: f32[1,128], index: 9, kind: input, shape index: {}]
  %s10 = inlined_call_operand.hbm [shape: f32[256,128], index: 10, kind: output, shape index: {}]
  %s11 = sld [smem:[#allocation0]]
  $region73: #{tpu_custom_call.1} parent=0
    _
  %s13 = ssub.s32 1, %s11
  %s14 = scalar_select 0, %s13, %s11
  $region1: #{tpu_custom_call.1} parent=0
    #allocation2 [shape = 'u8[131072]{0}', space=vmem, size = 0x20000, scoped, tag = 'output window, operand 0']
    #allocation3 [shape = 's32[2]{0}', space=sflag, size = 0x8, scoped, tag = 'scoped memory for tpu_custom_call.1']
    %15 = vsyncpa [#allocation3], 0
    %s16 = scalar_lea.sflag [#allocation3], 1
    %17 = vsyncpa %s16, 0
    loop: start=0, step=1, limit=4
    $region2: #{tpu_custom_call.1} parent=1 // loop_pre_header
      _
    $region3: #{tpu_custom_call.1} parent=1 // loop_header
      %s19 = sphi 0, %s23
      %p20 = scmp.ge.s32.totalorder %s19, 4
      %s29 = sphi 0, %s31
      %s32 = sphi 0, %s29
      %s33 = sphi 0, %s32
      %s49 = sphi 0, %s33
      %s55 = sphi 0, %s57
      %s58 = sphi 0, %s55
      %s59 = sphi 0, %s58
      %s75 = sphi 0, %s59
      %s81 = sphi 0, %s83
      %s84 = sphi 0, %s81
      %s85 = sphi 0, %s84
      %s101 = sphi 0, %s85
      %s105 = sphi 0, %s105
      %s107 = sphi 0, %s105
      %s108 = sphi 0, %s107
      %s122 = sphi 0, %s108
      %s126 = sphi 0, %s126
      %s128 = sphi 0, %s126
      %s129 = sphi 0, %s128
      %s143 = sphi 0, %s129
      %s147 = sphi 0, %s147
      %s149 = sphi 0, %s147
      %s150 = sphi 0, %s149
      %s164 = sphi 0, %s150
      %s168 = sphi 0, %s168
      %s170 = sphi 0, %s168
      %s171 = sphi 0, %s170
      %s185 = sphi 0, %s171
      %s189 = sphi 0, %s189
      %s191 = sphi 0, %s189
      %s192 = sphi 0, %s191
      %s206 = sphi 0, %s192
      %s210 = sphi 0, %s210
      %s212 = sphi 0, %s210
      %s213 = sphi 0, %s212
      %s227 = sphi 0, %s213
      %s231 = sphi 0, %s231
      %s233 = sphi 0, %s231
      %s234 = sphi 0, %s233
      %s248 = sphi 0, %s234
      %s254 = sphi 0, %s256
      %s257 = sphi 0, %s254
      %s258 = sphi 0, %s257
      %s274 = sphi 0, %s258
    $region4: #{tpu_custom_call.1} parent=1 // loop_header_branch
      %22 = sbr.rel (%p20) target = $region8
    $region5: #{tpu_custom_call.1} parent=1 // loop_body
      %s24 = ssub.s32 %s19, 1
      %s25 = ssub.s32 %s19, 2
      %s26 = sadd.s32 %s19, 1
      %s27 = ssub.s32 %s19, %s26
      %p28 = scmp.eq.s32.totalorder %s27, 0
      %s30 = sadd.s32 %s29, 1
      %s31 = scalar_select %p28, %s29, %s30
      %p34 = pneg %p28
      %p35 = scmp.eq.s32.totalorder %s19, 1
      %p36 = por %p34, %p35
      %p37 = scmp.ne.s32.totalorder %s29, %s32
      %p38 = scmp.eq.s32.totalorder %s19, 0
      %p39 = por %p37, %p38
      %p40 = scmp.ne.s32.totalorder %s29, %s32
      %p41 = scmp.eq.s32.totalorder %s24, 1
      %p42 = por %p40, %p41
      %p43 = scmp.ne.s32.totalorder %s32, %s33
      %p44 = scmp.eq.s32.totalorder %s24, 0
      %p45 = por %p43, %p44
      %p46 = scmp.ne.s32.totalorder %s32, %s33
      %p47 = scmp.eq.s32.totalorder %s25, 1
      %p48 = por %p46, %p47
      %p50 = scmp.ne.s32.totalorder %s33, %s49
      %p51 = scmp.eq.s32.totalorder %s25, 0
      %p52 = por %p50, %p51
      %s53 = ssub.s32 %s19, %s26
      %p54 = scmp.eq.s32.totalorder %s53, 0
      %s56 = sadd.s32 %s55, 1
      %s57 = scalar_select %p54, %s55, %s56
      %p60 = pneg %p54
      %p61 = scmp.eq.s32.totalorder %s19, 1
      %p62 = por %p60, %p61
      %p63 = scmp.ne.s32.totalorder %s55, %s58
      %p64 = scmp.eq.s32.totalorder %s19, 0
      %p65 = por %p63, %p64
      %p66 = scmp.ne.s32.totalorder %s55, %s58
      %p67 = scmp.eq.s32.totalorder %s24, 1
      %p68 = por %p66, %p67
      %p69 = scmp.ne.s32.totalorder %s58, %s59
      %p70 = scmp.eq.s32.totalorder %s24, 0
      %p71 = por %p69, %p70
      %p72 = scmp.ne.s32.totalorder %s58, %s59
      %p73 = scmp.eq.s32.totalorder %s25, 1
      %p74 = por %p72, %p73
      %p76 = scmp.ne.s32.totalorder %s59, %s75
      %p77 = scmp.eq.s32.totalorder %s25, 0
      %p78 = por %p76, %p77
      %s79 = ssub.s32 %s19, %s26
      %p80 = scmp.eq.s32.totalorder %s79, 0
      %s82 = sadd.s32 %s81, 1
      %s83 = scalar_select %p80, %s81, %s82
      %p86 = pneg %p80
      %p87 = scmp.eq.s32.totalorder %s19, 1
      %p88 = por %p86, %p87
      %p89 = scmp.ne.s32.totalorder %s81, %s84
      %p90 = scmp.eq.s32.totalorder %s19, 0
      %p91 = por %p89, %p90
      %p92 = scmp.ne.s32.totalorder %s81, %s84
      %p93 = scmp.eq.s32.totalorder %s24, 1
      %p94 = por %p92, %p93
      %p95 = scmp.ne.s32.totalorder %s84, %s85
      %p96 = scmp.eq.s32.totalorder %s24, 0
      %p97 = por %p95, %p96
      %p98 = scmp.ne.s32.totalorder %s84, %s85
      %p99 = scmp.eq.s32.totalorder %s25, 1
      %p100 = por %p98, %p99
      %p102 = scmp.ne.s32.totalorder %s85, %s101
      %p103 = scmp.eq.s32.totalorder %s25, 0
      %p104 = por %p102, %p103
      %s106 = sadd.s32 %s105, 1
      %p109 = scmp.eq.s32.totalorder %s19, 1
      %p110 = scmp.ne.s32.totalorder %s105, %s107
      %p111 = scmp.eq.s32.totalorder %s19, 0
      %p112 = por %p110, %p111
      %p113 = scmp.ne.s32.totalorder %s105, %s107
      %p114 = scmp.eq.s32.totalorder %s24, 1
      %p115 = por %p113, %p114
      %p116 = scmp.ne.s32.totalorder %s107, %s108
      %p117 = scmp.eq.s32.totalorder %s24, 0
      %p118 = por %p116, %p117
      %p119 = scmp.ne.s32.totalorder %s107, %s108
      %p120 = scmp.eq.s32.totalorder %s25, 1
      %p121 = por %p119, %p120
      %p123 = scmp.ne.s32.totalorder %s108, %s122
      %p124 = scmp.eq.s32.totalorder %s25, 0
      %p125 = por %p123, %p124
      %s127 = sadd.s32 %s126, 1
      %p130 = scmp.eq.s32.totalorder %s19, 1
      %p131 = scmp.ne.s32.totalorder %s126, %s128
      %p132 = scmp.eq.s32.totalorder %s19, 0
      %p133 = por %p131, %p132
      %p134 = scmp.ne.s32.totalorder %s126, %s128
      %p135 = scmp.eq.s32.totalorder %s24, 1
      %p136 = por %p134, %p135
      %p137 = scmp.ne.s32.totalorder %s128, %s129
      %p138 = scmp.eq.s32.totalorder %s24, 0
      %p139 = por %p137, %p138
      %p140 = scmp.ne.s32.totalorder %s128, %s129
      %p141 = scmp.eq.s32.totalorder %s25, 1
      %p142 = por %p140, %p141
      %p144 = scmp.ne.s32.totalorder %s129, %s143
      %p145 = scmp.eq.s32.totalorder %s25, 0
      %p146 = por %p144, %p145
      %s148 = sadd.s32 %s147, 1
      %p151 = scmp.eq.s32.totalorder %s19, 1
      %p152 = scmp.ne.s32.totalorder %s147, %s149
      %p153 = scmp.eq.s32.totalorder %s19, 0
      %p154 = por %p152, %p153
      %p155 = scmp.ne.s32.totalorder %s147, %s149
      %p156 = scmp.eq.s32.totalorder %s24, 1
      %p157 = por %p155, %p156
      %p158 = scmp.ne.s32.totalorder %s149, %s150
      %p159 = scmp.eq.s32.totalorder %s24, 0
      %p160 = por %p158, %p159
      %p161 = scmp.ne.s32.totalorder %s149, %s150
      %p162 = scmp.eq.s32.totalorder %s25, 1
      %p163 = por %p161, %p162
      %p165 = scmp.ne.s32.totalorder %s150, %s164
      %p166 = scmp.eq.s32.totalorder %s25, 0
      %p167 = por %p165, %p166
      %s169 = sadd.s32 %s168, 1
      %p172 = scmp.eq.s32.totalorder %s19, 1
      %p173 = scmp.ne.s32.totalorder %s168, %s170
      %p174 = scmp.eq.s32.totalorder %s19, 0
      %p175 = por %p173, %p174
      %p176 = scmp.ne.s32.totalorder %s168, %s170
      %p177 = scmp.eq.s32.totalorder %s24, 1
      %p178 = por %p176, %p177
      %p179 = scmp.ne.s32.totalorder %s170, %s171
      %p180 = scmp.eq.s32.totalorder %s24, 0
      %p181 = por %p179, %p180
      %p182 = scmp.ne.s32.totalorder %s170, %s171
      %p183 = scmp.eq.s32.totalorder %s25, 1
      %p184 = por %p182, %p183
      %p186 = scmp.ne.s32.totalorder %s171, %s185
      %p187 = scmp.eq.s32.totalorder %s25, 0
      %p188 = por %p186, %p187
      %s190 = sadd.s32 %s189, 1
      %p193 = scmp.eq.s32.totalorder %s19, 1
      %p194 = scmp.ne.s32.totalorder %s189, %s191
      %p195 = scmp.eq.s32.totalorder %s19, 0
      %p196 = por %p194, %p195
      %p197 = scmp.ne.s32.totalorder %s189, %s191
      %p198 = scmp.eq.s32.totalorder %s24, 1
      %p199 = por %p197, %p198
      %p200 = scmp.ne.s32.totalorder %s191, %s192
      %p201 = scmp.eq.s32.totalorder %s24, 0
      %p202 = por %p200, %p201
      %p203 = scmp.ne.s32.totalorder %s191, %s192
      %p204 = scmp.eq.s32.totalorder %s25, 1
      %p205 = por %p203, %p204
      %p207 = scmp.ne.s32.totalorder %s192, %s206
      %p208 = scmp.eq.s32.totalorder %s25, 0
      %p209 = por %p207, %p208
      %s211 = sadd.s32 %s210, 1
      %p214 = scmp.eq.s32.totalorder %s19, 1
      %p215 = scmp.ne.s32.totalorder %s210, %s212
      %p216 = scmp.eq.s32.totalorder %s19, 0
      %p217 = por %p215, %p216
      %p218 = scmp.ne.s32.totalorder %s210, %s212
      %p219 = scmp.eq.s32.totalorder %s24, 1
      %p220 = por %p218, %p219
      %p221 = scmp.ne.s32.totalorder %s212, %s213
      %p222 = scmp.eq.s32.totalorder %s24, 0
      %p223 = por %p221, %p222
      %p224 = scmp.ne.s32.totalorder %s212, %s213
      %p225 = scmp.eq.s32.totalorder %s25, 1
      %p226 = por %p224, %p225
      %p228 = scmp.ne.s32.totalorder %s213, %s227
      %p229 = scmp.eq.s32.totalorder %s25, 0
      %p230 = por %p228, %p229
      %s232 = sadd.s32 %s231, 1
      %p235 = scmp.eq.s32.totalorder %s19, 1
      %p236 = scmp.ne.s32.totalorder %s231, %s233
      %p237 = scmp.eq.s32.totalorder %s19, 0
      %p238 = por %p236, %p237
      %p239 = scmp.ne.s32.totalorder %s231, %s233
      %p240 = scmp.eq.s32.totalorder %s24, 1
      %p241 = por %p239, %p240
      %p242 = scmp.ne.s32.totalorder %s233, %s234
      %p243 = scmp.eq.s32.totalorder %s24, 0
      %p244 = por %p242, %p243
      %p245 = scmp.ne.s32.totalorder %s233, %s234
      %p246 = scmp.eq.s32.totalorder %s25, 1
      %p247 = por %p245, %p246
      %p249 = scmp.ne.s32.totalorder %s234, %s248
      %p250 = scmp.eq.s32.totalorder %s25, 0
      %p251 = por %p249, %p250
      %s252 = ssub.s32 %s19, %s26
      %p253 = scmp.eq.s32.totalorder %s252, 0
      %s255 = sadd.s32 %s254, 1
      %s256 = scalar_select %p253, %s254, %s255
      %p259 = pneg %p253
      %p260 = scmp.eq.s32.totalorder %s19, 1
      %p261 = por %p259, %p260
      %p262 = scmp.ne.s32.totalorder %s254, %s257
      %p263 = scmp.eq.s32.totalorder %s19, 0
      %p264 = por %p262, %p263
      %p265 = scmp.ne.s32.totalorder %s254, %s257
      %p266 = scmp.eq.s32.totalorder %s24, 1
      %p267 = por %p265, %p266
      %p268 = scmp.ne.s32.totalorder %s257, %s258
      %p269 = scmp.eq.s32.totalorder %s24, 0
      %p270 = por %p268, %p269
      %p271 = scmp.ne.s32.totalorder %s257, %s258
      %p272 = scmp.eq.s32.totalorder %s25, 1
      %p273 = por %p271, %p272
      %p275 = scmp.ne.s32.totalorder %s258, %s274
      %p276 = scmp.eq.s32.totalorder %s25, 0
      %p277 = por %p275, %p276
      %p278 = scmp.le.s32.totalorder 1, %s19
      %p279 = scmp.lt.s32.totalorder %s19, 3
      %p280 = pnand %p278, %p279
      %p281 = pneg %p280
      // Predicated region
      $region9: #{tpu_custom_call.1} parent=5 // pred_check
        _
      $region10: #{tpu_custom_call.1} parent=5 // pred_check_branch
        %283 = sbr.rel (%p280) target = $region12
      $region11: #{tpu_custom_call.1} parent=5 // pred_region
        %s284 = ssub.s32 %s19, 1
        // Predicated region
        $region13: #{tpu_custom_call.1} parent=11 // pred_check
          %p285 = pneg %p118
        $region14: #{tpu_custom_call.1} parent=11 // pred_check_branch
          %287 = sbr.rel (%p285) target = $region16
        $region15: #{tpu_custom_call.1} parent=11 // pred_region
          _
        $region16: #{tpu_custom_call.1} parent=11 // pred_fallthru
          _
        // Predicated region
        $region17: #{tpu_custom_call.1} parent=11 // pred_check
          %p288 = pneg %p139
        $region18: #{tpu_custom_call.1} parent=11 // pred_check_branch
          %290 = sbr.rel (%p288) target = $region20
        $region19: #{tpu_custom_call.1} parent=11 // pred_region
          _
        $region20: #{tpu_custom_call.1} parent=11 // pred_fallthru
          _
        // Predicated region
        $region21: #{tpu_custom_call.1} parent=11 // pred_check
          %p291 = pneg %p160
        $region22: #{tpu_custom_call.1} parent=11 // pred_check_branch
          %293 = sbr.rel (%p291) target = $region24
        $region23: #{tpu_custom_call.1} parent=11 // pred_region
          _
        $region24: #{tpu_custom_call.1} parent=11 // pred_fallthru
          _
        // Predicated region
        $region25: #{tpu_custom_call.1} parent=11 // pred_check
          %p294 = pneg %p181
        $region26: #{tpu_custom_call.1} parent=11 // pred_check_branch
          %296 = sbr.rel (%p294) target = $region28
        $region27: #{tpu_custom_call.1} parent=11 // pred_region
          _
        $region28: #{tpu_custom_call.1} parent=11 // pred_fallthru
          _
        // Predicated region
        $region29: #{tpu_custom_call.1} parent=11 // pred_check
          %p297 = pneg %p202
        $region30: #{tpu_custom_call.1} parent=11 // pred_check_branch
          %299 = sbr.rel (%p297) target = $region32
        $region31: #{tpu_custom_call.1} parent=11 // pred_region
          _
        $region32: #{tpu_custom_call.1} parent=11 // pred_fallthru
          _
        // Predicated region
        $region33: #{tpu_custom_call.1} parent=11 // pred_check
          %p300 = pneg %p223
        $region34: #{tpu_custom_call.1} parent=11 // pred_check_branch
          %302 = sbr.rel (%p300) target = $region36
        $region35: #{tpu_custom_call.1} parent=11 // pred_region
          _
        $region36: #{tpu_custom_call.1} parent=11 // pred_fallthru
          _
        // Predicated region
        $region37: #{tpu_custom_call.1} parent=11 // pred_check
          %p303 = pneg %p244
        $region38: #{tpu_custom_call.1} parent=11 // pred_check_branch
          %305 = sbr.rel (%p303) target = $region40
        $region39: #{tpu_custom_call.1} parent=11 // pred_region
          _
        $region40: #{tpu_custom_call.1} parent=11 // pred_fallthru
          _
      $region12: #{tpu_custom_call.1} parent=5 // pred_fallthru
        _
      %p306 = scmp.lt.s32.totalorder %s19, 2
      // Predicated region
      $region41: #{tpu_custom_call.1} parent=5 // pred_check
        %p307 = pneg %p306
      $region42: #{tpu_custom_call.1} parent=5 // pred_check_branch
        %309 = sbr.rel (%p307) target = $region44
      $region43: #{tpu_custom_call.1} parent=5 // pred_region
        // Predicated region
        $region45: #{tpu_custom_call.1} parent=43 // pred_check
          %p310 = pneg %p39
        $region46: #{tpu_custom_call.1} parent=43 // pred_check_branch
          %312 = sbr.rel (%p310) target = $region48
        $region47: #{tpu_custom_call.1} parent=43 // pred_region
          %s313 = smul.u32 16, %s19
          %p314 = scmp.lt.s32.totalorder %s313, 31
          %s315 = scalar_select %p314, %s313, 31
          %s316 = smul.addr %s315, 8
          %s317 = scalar_lea.vmem %s0, %s316
          %s318 = smul.u32 16, %s19
        $region48: #{tpu_custom_call.1} parent=43 // pred_fallthru
          _
        // Predicated region
        $region49: #{tpu_custom_call.1} parent=43 // pred_check
          %p319 = pneg %p65
        $region50: #{tpu_custom_call.1} parent=43 // pred_check_branch
          %321 = sbr.rel (%p319) target = $region52
        $region51: #{tpu_custom_call.1} parent=43 // pred_region
          %s322 = smul.u32 16, %s19
          %p323 = scmp.lt.s32.totalorder %s322, 31
          %s324 = scalar_select %p323, %s322, 31
          %s325 = smul.addr %s324, 8
          %s326 = scalar_lea.vmem %s1, %s325
          %s327 = smul.u32 16, %s19
        $region52: #{tpu_custom_call.1} parent=43 // pred_fallthru
          _
        // Predicated region
        $region53: #{tpu_custom_call.1} parent=43 // pred_check
          %p328 = pneg %p91
        $region54: #{tpu_custom_call.1} parent=43 // pred_check_branch
          %330 = sbr.rel (%p328) target = $region56
        $region55: #{tpu_custom_call.1} parent=43 // pred_region
          %s331 = smul.u32 16, %s19
          %p332 = scmp.lt.s32.totalorder %s331, 31
          %s333 = scalar_select %p332, %s331, 31
          %s334 = smul.addr %s333, 4
          %s335 = scalar_lea.vmem %s2, %s334
          %s336 = smul.u32 16, %s19
        $region56: #{tpu_custom_call.1} parent=43 // pred_fallthru
          _
      $region44: #{tpu_custom_call.1} parent=5 // pred_fallthru
        _
      %p337 = scmp.le.s32.totalorder 1, %s19
      %p338 = scmp.lt.s32.totalorder %s19, 3
      %p339 = pnand %p337, %p338
      %p340 = pneg %p339
      // Predicated region
      $region57: #{tpu_custom_call.1} parent=5 // pred_check
        _
      $region58: #{tpu_custom_call.1} parent=5 // pred_check_branch
        %342 = sbr.rel (%p339) target = $region60
      $region59: #{tpu_custom_call.1} parent=5 // pred_region
        %s343 = ssub.s32 %s19, 1
        %s344 = smul.u32 16, %s24
        %p345 = scmp.lt.s32.totalorder %s344, 31
        %s346 = scalar_select %p345, %s344, 31
        %s347 = smul.addr %s346, 8
        %s348 = scalar_lea.vmem %s0, %s347
        %p349 = pneg %p45
        %p350 = pneg %p42
        %s351 = smul.u32 16, %s24
        %p352 = scmp.lt.s32.totalorder %s351, 31
        %s353 = scalar_select %p352, %s351, 31
        %s354 = smul.addr %s353, 8
        %s355 = scalar_lea.vmem %s1, %s354
        %p356 = pneg %p71
        %p357 = pneg %p68
        %s358 = smul.u32 16, %s24
        %p359 = scmp.lt.s32.totalorder %s358, 31
        %s360 = scalar_select %p359, %s358, 31
        %s361 = smul.addr %s360, 4
        %s362 = scalar_lea.vmem %s2, %s361
        %p363 = pneg %p97
        %p364 = pneg %p94
        %p365 = pneg %p118
        %p366 = pneg %p115
        %p367 = pneg %p139
        %p368 = pneg %p136
        %p369 = pneg %p160
        %p370 = pneg %p157
        %p371 = pneg %p181
        %p372 = pneg %p178
        %p373 = pneg %p202
        %p374 = pneg %p199
        %p375 = pneg %p223
        %p376 = pneg %p220
        %p377 = pneg %p244
        %p378 = pneg %p241
        %p379 = pneg %p270
        %p380 = pneg %p267
        %s381 = sand.u32 %s257, 1
        %s382 = scalar_lea.sflag [#allocation3], %s381
        %s383 = sand.u32 %s257, 1
        %s384 = smul.addr %s383, 128
        %s385 = scalar_lea.vmem [#allocation2], %s384
        %s386 = smul.u32 16, %s24
        %p387 = scmp.lt.s32.totalorder %s386, 31
        %s388 = scalar_select %p387, %s386, 31
        %s389 = smul.addr %s388, 8
        %s390 = scalar_lea.vmem %s0, %s389
        %s391 = smul.u32 16, %s24
        %s392 = smul.u32 16, %s24
        %p393 = scmp.lt.s32.totalorder %s392, 31
        %s394 = scalar_select %p393, %s392, 31
        %s395 = smul.addr %s394, 8
        %s396 = scalar_lea.vmem %s1, %s395
        %s397 = smul.u32 16, %s24
        %s398 = smul.u32 16, %s24
        %p399 = scmp.lt.s32.totalorder %s398, 31
        %s400 = scalar_select %p399, %s398, 31
        %s401 = smul.addr %s400, 4
        %s402 = scalar_lea.vmem %s2, %s401
        %s403 = smul.u32 16, %s24
        %s404 = smul.u32 16, %s24
        %v406 = vld [vmem:[%s390] sm:$0xff]
        %v407 = vld [vmem:[%s390 + $0x8] sm:$0xff]
        %v408 = vld [vmem:[%s390 + $0x10] sm:$0xff]
        %v409 = vld [vmem:[%s390 + $0x18] sm:$0xff]
        %v410 = vld [vmem:[%s390 + $0x20] sm:$0xff]
        %v411 = vld [vmem:[%s390 + $0x28] sm:$0xff]
        %v412 = vld [vmem:[%s390 + $0x30] sm:$0xff]
        %v413 = vld [vmem:[%s390 + $0x38] sm:$0xff]
        %v414 = vld [vmem:[%s390 + $0x40] sm:$0xff]
        %v415 = vld [vmem:[%s390 + $0x48] sm:$0xff]
        %v416 = vld [vmem:[%s390 + $0x50] sm:$0xff]
        %v417 = vld [vmem:[%s390 + $0x58] sm:$0xff]
        %v418 = vld [vmem:[%s390 + $0x60] sm:$0xff]
        %v419 = vld [vmem:[%s390 + $0x68] sm:$0xff]
        %v420 = vld [vmem:[%s390 + $0x70] sm:$0xff]
        %v421 = vld [vmem:[%s390 + $0x78] sm:$0xff]
        %v422 = vld [vmem:[%s3] sm:$0x7]
        %424 = vset.pattern.permute.xlu0 0
        %425 = vperm.xlu0 %424, %v406
        %v426 = vpop.permute.xlu0 %425
        %429 = vset.pattern.permute.xlu0 0
        %430 = vperm.xlu0 %429, %v407
        %v431 = vpop.permute.xlu0 %430
        %434 = vset.pattern.permute.xlu0 0
        %435 = vperm.xlu0 %434, %v408
        %v436 = vpop.permute.xlu0 %435
        %439 = vset.pattern.permute.xlu0 0
        %440 = vperm.xlu0 %439, %v409
        %v441 = vpop.permute.xlu0 %440
        %444 = vset.pattern.permute.xlu0 0
        %445 = vperm.xlu0 %444, %v410
        %v446 = vpop.permute.xlu0 %445
        %449 = vset.pattern.permute.xlu0 0
        %450 = vperm.xlu0 %449, %v411
        %v451 = vpop.permute.xlu0 %450
        %454 = vset.pattern.permute.xlu0 0
        %455 = vperm.xlu0 %454, %v412
        %v456 = vpop.permute.xlu0 %455
        %459 = vset.pattern.permute.xlu0 0
        %460 = vperm.xlu0 %459, %v413
        %v461 = vpop.permute.xlu0 %460
        %464 = vset.pattern.permute.xlu0 0
        %465 = vperm.xlu0 %464, %v414
        %v466 = vpop.permute.xlu0 %465
        %469 = vset.pattern.permute.xlu0 0
        %470 = vperm.xlu0 %469, %v415
        %v471 = vpop.permute.xlu0 %470
        %474 = vset.pattern.permute.xlu0 0
        %475 = vperm.xlu0 %474, %v416
        %v476 = vpop.permute.xlu0 %475
        %479 = vset.pattern.permute.xlu0 0
        %480 = vperm.xlu0 %479, %v417
        %v481 = vpop.permute.xlu0 %480
        %484 = vset.pattern.permute.xlu0 0
        %485 = vperm.xlu0 %484, %v418
        %v486 = vpop.permute.xlu0 %485
        %489 = vset.pattern.permute.xlu0 0
        %490 = vperm.xlu0 %489, %v419
        %v491 = vpop.permute.xlu0 %490
        %494 = vset.pattern.permute.xlu0 0
        %495 = vperm.xlu0 %494, %v420
        %v496 = vpop.permute.xlu0 %495
        %499 = vset.pattern.permute.xlu0 0
        %500 = vperm.xlu0 %499, %v421
        %v501 = vpop.permute.xlu0 %500
        %v503 = vlaneseq
        %v504 = vshrl.u32 %v503, 7
        %v505 = vsub.s32 0, %v504
        %v506 = vrot.slane %v422, %v505
        %v507 = vsub.f32 %v426, %v506
        %v508 = vsub.f32 %v431, %v506
        %v509 = vsub.f32 %v436, %v506
        %v510 = vsub.f32 %v441, %v506
        %v511 = vsub.f32 %v446, %v506
        %v512 = vsub.f32 %v451, %v506
        %v513 = vsub.f32 %v456, %v506
        %v514 = vsub.f32 %v461, %v506
        %v515 = vsub.f32 %v466, %v506
        %v516 = vsub.f32 %v471, %v506
        %v517 = vsub.f32 %v476, %v506
        %v518 = vsub.f32 %v481, %v506
        %v519 = vsub.f32 %v486, %v506
        %v520 = vsub.f32 %v491, %v506
        %v521 = vsub.f32 %v496, %v506
        %v522 = vsub.f32 %v501, %v506
        %523 = vset.pattern.permute.xlu0 1
        %524 = vperm.xlu0 %523, %v406
        %v525 = vpop.permute.xlu0 %524
        %527 = vset.pattern.permute.xlu0 1
        %528 = vperm.xlu0 %527, %v407
        %v529 = vpop.permute.xlu0 %528
        %531 = vset.pattern.permute.xlu0 1
        %532 = vperm.xlu0 %531, %v408
        %v533 = vpop.permute.xlu0 %532
        %535 = vset.pattern.permute.xlu0 1
        %536 = vperm.xlu0 %535, %v409
        %v537 = vpop.permute.xlu0 %536
        %539 = vset.pattern.permute.xlu0 1
        %540 = vperm.xlu0 %539, %v410
        %v541 = vpop.permute.xlu0 %540
        %543 = vset.pattern.permute.xlu0 1
        %544 = vperm.xlu0 %543, %v411
        %v545 = vpop.permute.xlu0 %544
        %547 = vset.pattern.permute.xlu0 1
        %548 = vperm.xlu0 %547, %v412
        %v549 = vpop.permute.xlu0 %548
        %551 = vset.pattern.permute.xlu0 1
        %552 = vperm.xlu0 %551, %v413
        %v553 = vpop.permute.xlu0 %552
        %555 = vset.pattern.permute.xlu0 1
        %556 = vperm.xlu0 %555, %v414
        %v557 = vpop.permute.xlu0 %556
        %559 = vset.pattern.permute.xlu0 1
        %560 = vperm.xlu0 %559, %v415
        %v561 = vpop.permute.xlu0 %560
        %563 = vset.pattern.permute.xlu0 1
        %564 = vperm.xlu0 %563, %v416
        %v565 = vpop.permute.xlu0 %564
        %567 = vset.pattern.permute.xlu0 1
        %568 = vperm.xlu0 %567, %v417
        %v569 = vpop.permute.xlu0 %568
        %571 = vset.pattern.permute.xlu0 1
        %572 = vperm.xlu0 %571, %v418
        %v573 = vpop.permute.xlu0 %572
        %575 = vset.pattern.permute.xlu0 1
        %576 = vperm.xlu0 %575, %v419
        %v577 = vpop.permute.xlu0 %576
        %579 = vset.pattern.permute.xlu0 1
        %580 = vperm.xlu0 %579, %v420
        %v581 = vpop.permute.xlu0 %580
        %583 = vset.pattern.permute.xlu0 1
        %584 = vperm.xlu0 %583, %v421
        %v585 = vpop.permute.xlu0 %584
        %v587 = vlaneseq
        %v588 = vshrl.u32 %v587, 7
        %v589 = vsub.s32 1, %v588
        %v590 = vrot.slane %v422, %v589
        %v591 = vsub.f32 %v525, %v590
        %v592 = vsub.f32 %v529, %v590
        %v593 = vsub.f32 %v533, %v590
        %v594 = vsub.f32 %v537, %v590
        %v595 = vsub.f32 %v541, %v590
        %v596 = vsub.f32 %v545, %v590
        %v597 = vsub.f32 %v549, %v590
        %v598 = vsub.f32 %v553, %v590
        %v599 = vsub.f32 %v557, %v590
        %v600 = vsub.f32 %v561, %v590
        %v601 = vsub.f32 %v565, %v590
        %v602 = vsub.f32 %v569, %v590
        %v603 = vsub.f32 %v573, %v590
        %v604 = vsub.f32 %v577, %v590
        %v605 = vsub.f32 %v581, %v590
        %v606 = vsub.f32 %v585, %v590
        %607 = vset.pattern.permute.xlu0 2
        %608 = vperm.xlu0 %607, %v406
        %v609 = vpop.permute.xlu0 %608
        %611 = vset.pattern.permute.xlu0 2
        %612 = vperm.xlu0 %611, %v407
        %v613 = vpop.permute.xlu0 %612
        %615 = vset.pattern.permute.xlu0 2
        %616 = vperm.xlu0 %615, %v408
        %v617 = vpop.permute.xlu0 %616
        %619 = vset.pattern.permute.xlu0 2
        %620 = vperm.xlu0 %619, %v409
        %v621 = vpop.permute.xlu0 %620
        %623 = vset.pattern.permute.xlu0 2
        %624 = vperm.xlu0 %623, %v410
        %v625 = vpop.permute.xlu0 %624
        %627 = vset.pattern.permute.xlu0 2
        %628 = vperm.xlu0 %627, %v411
        %v629 = vpop.permute.xlu0 %628
        %631 = vset.pattern.permute.xlu0 2
        %632 = vperm.xlu0 %631, %v412
        %v633 = vpop.permute.xlu0 %632
        %635 = vset.pattern.permute.xlu0 2
        %636 = vperm.xlu0 %635, %v413
        %v637 = vpop.permute.xlu0 %636
        %639 = vset.pattern.permute.xlu0 2
        %640 = vperm.xlu0 %639, %v414
        %v641 = vpop.permute.xlu0 %640
        %643 = vset.pattern.permute.xlu0 2
        %644 = vperm.xlu0 %643, %v415
        %v645 = vpop.permute.xlu0 %644
        %647 = vset.pattern.permute.xlu0 2
        %648 = vperm.xlu0 %647, %v416
        %v649 = vpop.permute.xlu0 %648
        %651 = vset.pattern.permute.xlu0 2
        %652 = vperm.xlu0 %651, %v417
        %v653 = vpop.permute.xlu0 %652
        %655 = vset.pattern.permute.xlu0 2
        %656 = vperm.xlu0 %655, %v418
        %v657 = vpop.permute.xlu0 %656
        %659 = vset.pattern.permute.xlu0 2
        %660 = vperm.xlu0 %659, %v419
        %v661 = vpop.permute.xlu0 %660
        %663 = vset.pattern.permute.xlu0 2
        %664 = vperm.xlu0 %663, %v420
        %v665 = vpop.permute.xlu0 %664
        %667 = vset.pattern.permute.xlu0 2
        %668 = vperm.xlu0 %667, %v421
        %v669 = vpop.permute.xlu0 %668
        %v671 = vlaneseq
        %v672 = vshrl.u32 %v671, 7
        %v673 = vsub.s32 2, %v672
        %v674 = vrot.slane %v422, %v673
        %v675 = vsub.f32 %v609, %v674
        %v676 = vsub.f32 %v613, %v674
        %v677 = vsub.f32 %v617, %v674
        %v678 = vsub.f32 %v621, %v674
        %v679 = vsub.f32 %v625, %v674
        %v680 = vsub.f32 %v629, %v674
        %v681 = vsub.f32 %v633, %v674
        %v682 = vsub.f32 %v637, %v674
        %v683 = vsub.f32 %v641, %v674
        %v684 = vsub.f32 %v645, %v674
        %v685 = vsub.f32 %v649, %v674
        %v686 = vsub.f32 %v653, %v674
        %v687 = vsub.f32 %v657, %v674
        %v688 = vsub.f32 %v661, %v674
        %v689 = vsub.f32 %v665, %v674
        %v690 = vsub.f32 %v669, %v674
        %v691 = vmul.f32 %v507, %v507
        %v692 = vmul.f32 %v508, %v508
        %v693 = vmul.f32 %v509, %v509
        %v694 = vmul.f32 %v510, %v510
        %v695 = vmul.f32 %v511, %v511
        %v696 = vmul.f32 %v512, %v512
        %v697 = vmul.f32 %v513, %v513
        %v698 = vmul.f32 %v514, %v514
        %v699 = vmul.f32 %v515, %v515
        %v700 = vmul.f32 %v516, %v516
        %v701 = vmul.f32 %v517, %v517
        %v702 = vmul.f32 %v518, %v518
        %v703 = vmul.f32 %v519, %v519
        %v704 = vmul.f32 %v520, %v520
        %v705 = vmul.f32 %v521, %v521
        %v706 = vmul.f32 %v522, %v522
        %v707 = vmul.f32 %v591, %v591
        %v708 = vmul.f32 %v592, %v592
        %v709 = vmul.f32 %v593, %v593
        %v710 = vmul.f32 %v594, %v594
        %v711 = vmul.f32 %v595, %v595
        %v712 = vmul.f32 %v596, %v596
        %v713 = vmul.f32 %v597, %v597
        %v714 = vmul.f32 %v598, %v598
        %v715 = vmul.f32 %v599, %v599
        %v716 = vmul.f32 %v600, %v600
        %v717 = vmul.f32 %v601, %v601
        %v718 = vmul.f32 %v602, %v602
        %v719 = vmul.f32 %v603, %v603
        %v720 = vmul.f32 %v604, %v604
        %v721 = vmul.f32 %v605, %v605
        %v722 = vmul.f32 %v606, %v606
        %v723 = vadd.f32 %v691, %v707
        %v724 = vadd.f32 %v692, %v708
        %v725 = vadd.f32 %v693, %v709
        %v726 = vadd.f32 %v694, %v710
        %v727 = vadd.f32 %v695, %v711
        %v728 = vadd.f32 %v696, %v712
        %v729 = vadd.f32 %v697, %v713
        %v730 = vadd.f32 %v698, %v714
        %v731 = vadd.f32 %v699, %v715
        %v732 = vadd.f32 %v700, %v716
        %v733 = vadd.f32 %v701, %v717
        %v734 = vadd.f32 %v702, %v718
        %v735 = vadd.f32 %v703, %v719
        %v736 = vadd.f32 %v704, %v720
        %v737 = vadd.f32 %v705, %v721
        %v738 = vadd.f32 %v706, %v722
        %v739 = vmul.f32 %v675, %v675
        %v740 = vmul.f32 %v676, %v676
        %v741 = vmul.f32 %v677, %v677
        %v742 = vmul.f32 %v678, %v678
        %v743 = vmul.f32 %v679, %v679
        %v744 = vmul.f32 %v680, %v680
        %v745 = vmul.f32 %v681, %v681
        %v746 = vmul.f32 %v682, %v682
        %v747 = vmul.f32 %v683, %v683
        %v748 = vmul.f32 %v684, %v684
        %v749 = vmul.f32 %v685, %v685
        %v750 = vmul.f32 %v686, %v686
        %v751 = vmul.f32 %v687, %v687
        %v752 = vmul.f32 %v688, %v688
        %v753 = vmul.f32 %v689, %v689
        %v754 = vmul.f32 %v690, %v690
        %v755 = vadd.f32 %v723, %v739
        %v756 = vadd.f32 %v724, %v740
        %v757 = vadd.f32 %v725, %v741
        %v758 = vadd.f32 %v726, %v742
        %v759 = vadd.f32 %v727, %v743
        %v760 = vadd.f32 %v728, %v744
        %v761 = vadd.f32 %v729, %v745
        %v762 = vadd.f32 %v730, %v746
        %v763 = vadd.f32 %v731, %v747
        %v764 = vadd.f32 %v732, %v748
        %v765 = vadd.f32 %v733, %v749
        %v766 = vadd.f32 %v734, %v750
        %v767 = vadd.f32 %v735, %v751
        %v768 = vadd.f32 %v736, %v752
        %v769 = vadd.f32 %v737, %v753
        %v770 = vadd.f32 %v738, %v754
        %v771 = vld [vmem:[%s396] sm:$0xff]
        %v772 = vld [vmem:[%s396 + $0x8] sm:$0xff]
        %v773 = vld [vmem:[%s396 + $0x10] sm:$0xff]
        %v774 = vld [vmem:[%s396 + $0x18] sm:$0xff]
        %v775 = vld [vmem:[%s396 + $0x20] sm:$0xff]
        %v776 = vld [vmem:[%s396 + $0x28] sm:$0xff]
        %v777 = vld [vmem:[%s396 + $0x30] sm:$0xff]
        %v778 = vld [vmem:[%s396 + $0x38] sm:$0xff]
        %v779 = vld [vmem:[%s396 + $0x40] sm:$0xff]
        %v780 = vld [vmem:[%s396 + $0x48] sm:$0xff]
        %v781 = vld [vmem:[%s396 + $0x50] sm:$0xff]
        %v782 = vld [vmem:[%s396 + $0x58] sm:$0xff]
        %v783 = vld [vmem:[%s396 + $0x60] sm:$0xff]
        %v784 = vld [vmem:[%s396 + $0x68] sm:$0xff]
        %v785 = vld [vmem:[%s396 + $0x70] sm:$0xff]
        %v786 = vld [vmem:[%s396 + $0x78] sm:$0xff]
        %v787 = vld [vmem:[%s4] sm:$0x1]
        %788 = vset.pattern.permute.xlu0 0
        %789 = vperm.xlu0 %788, %v771
        %v790 = vpop.permute.xlu0 %789
        %791 = vset.pattern.permute.xlu0 0
        %792 = vperm.xlu0 %791, %v772
        %v793 = vpop.permute.xlu0 %792
        %794 = vset.pattern.permute.xlu0 0
        %795 = vperm.xlu0 %794, %v773
        %v796 = vpop.permute.xlu0 %795
        %797 = vset.pattern.permute.xlu0 0
        %798 = vperm.xlu0 %797, %v774
        %v799 = vpop.permute.xlu0 %798
        %800 = vset.pattern.permute.xlu0 0
        %801 = vperm.xlu0 %800, %v775
        %v802 = vpop.permute.xlu0 %801
        %803 = vset.pattern.permute.xlu0 0
        %804 = vperm.xlu0 %803, %v776
        %v805 = vpop.permute.xlu0 %804
        %806 = vset.pattern.permute.xlu0 0
        %807 = vperm.xlu0 %806, %v777
        %v808 = vpop.permute.xlu0 %807
        %809 = vset.pattern.permute.xlu0 0
        %810 = vperm.xlu0 %809, %v778
        %v811 = vpop.permute.xlu0 %810
        %812 = vset.pattern.permute.xlu0 0
        %813 = vperm.xlu0 %812, %v779
        %v814 = vpop.permute.xlu0 %813
        %815 = vset.pattern.permute.xlu0 0
        %816 = vperm.xlu0 %815, %v780
        %v817 = vpop.permute.xlu0 %816
        %818 = vset.pattern.permute.xlu0 0
        %819 = vperm.xlu0 %818, %v781
        %v820 = vpop.permute.xlu0 %819
        %821 = vset.pattern.permute.xlu0 0
        %822 = vperm.xlu0 %821, %v782
        %v823 = vpop.permute.xlu0 %822
        %824 = vset.pattern.permute.xlu0 0
        %825 = vperm.xlu0 %824, %v783
        %v826 = vpop.permute.xlu0 %825
        %827 = vset.pattern.permute.xlu0 0
        %828 = vperm.xlu0 %827, %v784
        %v829 = vpop.permute.xlu0 %828
        %830 = vset.pattern.permute.xlu0 0
        %831 = vperm.xlu0 %830, %v785
        %v832 = vpop.permute.xlu0 %831
        %833 = vset.pattern.permute.xlu0 0
        %834 = vperm.xlu0 %833, %v786
        %v835 = vpop.permute.xlu0 %834
        %v836 = vlaneseq
        %v837 = vshrl.u32 %v836, 7
        %v838 = vsub.s32 0, %v837
        %v839 = vrot.slane %v787, %v838
        %vm840 = vcmp.eq.s32.totalorder %v790, %v839
        %vm841 = vcmp.eq.s32.totalorder %v793, %v839
        %vm842 = vcmp.eq.s32.totalorder %v796, %v839
        %vm843 = vcmp.eq.s32.totalorder %v799, %v839
        %vm844 = vcmp.eq.s32.totalorder %v802, %v839
        %vm845 = vcmp.eq.s32.totalorder %v805, %v839
        %vm846 = vcmp.eq.s32.totalorder %v808, %v839
        %vm847 = vcmp.eq.s32.totalorder %v811, %v839
        %vm848 = vcmp.eq.s32.totalorder %v814, %v839
        %vm849 = vcmp.eq.s32.totalorder %v817, %v839
        %vm850 = vcmp.eq.s32.totalorder %v820, %v839
        %vm851 = vcmp.eq.s32.totalorder %v823, %v839
        %vm852 = vcmp.eq.s32.totalorder %v826, %v839
        %vm853 = vcmp.eq.s32.totalorder %v829, %v839
        %vm854 = vcmp.eq.s32.totalorder %v832, %v839
        %vm855 = vcmp.eq.s32.totalorder %v835, %v839
        %v856 = vsel %vm840, %v755, 1e+30
        %v857 = vsel %vm841, %v756, 1e+30
        %v858 = vsel %vm842, %v757, 1e+30
        %v859 = vsel %vm843, %v758, 1e+30
        %v860 = vsel %vm844, %v759, 1e+30
        %v861 = vsel %vm845, %v760, 1e+30
        %v862 = vsel %vm846, %v761, 1e+30
        %v863 = vsel %vm847, %v762, 1e+30
        %v864 = vsel %vm848, %v763, 1e+30
        %v865 = vsel %vm849, %v764, 1e+30
        %v866 = vsel %vm850, %v765, 1e+30
        %v867 = vsel %vm851, %v766, 1e+30
        %v868 = vsel %vm852, %v767, 1e+30
        %v869 = vsel %vm853, %v768, 1e+30
        %v870 = vsel %vm854, %v769, 1e+30
        %v871 = vsel %vm855, %v770, 1e+30
        %v872 = vlaneseq
        %v873 = vand.u32 %v872, 127
        %v890 = vand.u32 %v856, 4294967232
        %v891 = vand.u32 %v857, 4294967232
        %v892 = vand.u32 %v858, 4294967232
        %v893 = vand.u32 %v859, 4294967232
        %v894 = vand.u32 %v860, 4294967232
        %v895 = vand.u32 %v861, 4294967232
        %v896 = vand.u32 %v862, 4294967232
        %v897 = vand.u32 %v863, 4294967232
        %v898 = vand.u32 %v864, 4294967232
        %v899 = vand.u32 %v865, 4294967232
        %v900 = vand.u32 %v866, 4294967232
        %v901 = vand.u32 %v867, 4294967232
        %v902 = vand.u32 %v868, 4294967232
        %v903 = vand.u32 %v869, 4294967232
        %v904 = vand.u32 %v870, 4294967232
        %v905 = vand.u32 %v871, 4294967232
        %v906 = vor.u32 %v890, %v873
        %v907 = vor.u32 %v891, %v873
        %v908 = vor.u32 %v892, %v873
        %v909 = vor.u32 %v893, %v873
        %v910 = vor.u32 %v894, %v873
        %v911 = vor.u32 %v895, %v873
        %v912 = vor.u32 %v896, %v873
        %v913 = vor.u32 %v897, %v873
        %v914 = vor.u32 %v898, %v873
        %v915 = vor.u32 %v899, %v873
        %v916 = vor.u32 %v900, %v873
        %v917 = vor.u32 %v901, %v873
        %v918 = vor.u32 %v902, %v873
        %v919 = vor.u32 %v903, %v873
        %v920 = vor.u32 %v904, %v873
        %v921 = vor.u32 %v905, %v873
        %vm922 = vcmask 523264
        %v923 = vsel %vm922, %v906, 2147483647
        %v924 = vand.u32 %v923, 65535
        %v925 = vshra.s32 %v923, 16
        %v926 = vcvt.s32.f32 %v924
        %v927 = vcvt.s32.f32 %v925
        %928 = vmin.xlane.f32.xlu0 %v927
        %v929 = vpop.xlane.xlu0 %928
        %vm930 = vcmp.eq.f32.partialorder %v927, %v929
        %v931 = vsel %vm930, %v926, inf
        %932 = vmin.xlane.f32.xlu0 %v931
        %v933 = vpop.xlane.xlu0 %932
        %v934 = vcvt.f32.s32 %v933
        %v935 = vcvt.f32.s32 %v929
        %v936 = vshll.u32 %v935, 16
        %v937 = vadd.s32 %v936, %v934
        %v938 = vsel %vm922, %v907, 2147483647
        %v939 = vand.u32 %v938, 65535
        %v940 = vshra.s32 %v938, 16
        %v941 = vcvt.s32.f32 %v939
        %v942 = vcvt.s32.f32 %v940
        %943 = vmin.xlane.f32.xlu0 %v942
        %v944 = vpop.xlane.xlu0 %943
        %vm945 = vcmp.eq.f32.partialorder %v942, %v944
        %v946 = vsel %vm945, %v941, inf
        %947 = vmin.xlane.f32.xlu0 %v946
        %v948 = vpop.xlane.xlu0 %947
        %v949 = vcvt.f32.s32 %v948
        %v950 = vcvt.f32.s32 %v944
        %v951 = vshll.u32 %v950, 16
        %v952 = vadd.s32 %v951, %v949
        %v953 = vsel %vm922, %v908, 2147483647
        %v954 = vand.u32 %v953, 65535
        %v955 = vshra.s32 %v953, 16
        %v956 = vcvt.s32.f32 %v954
        %v957 = vcvt.s32.f32 %v955
        %958 = vmin.xlane.f32.xlu0 %v957
        %v959 = vpop.xlane.xlu0 %958
        %vm960 = vcmp.eq.f32.partialorder %v957, %v959
        %v961 = vsel %vm960, %v956, inf
        %962 = vmin.xlane.f32.xlu0 %v961
        %v963 = vpop.xlane.xlu0 %962
        %v964 = vcvt.f32.s32 %v963
        %v965 = vcvt.f32.s32 %v959
        %v966 = vshll.u32 %v965, 16
        %v967 = vadd.s32 %v966, %v964
        %v968 = vsel %vm922, %v909, 2147483647
        %v969 = vand.u32 %v968, 65535
        %v970 = vshra.s32 %v968, 16
        %v971 = vcvt.s32.f32 %v969
        %v972 = vcvt.s32.f32 %v970
        %973 = vmin.xlane.f32.xlu0 %v972
        %v974 = vpop.xlane.xlu0 %973
        %vm975 = vcmp.eq.f32.partialorder %v972, %v974
        %v976 = vsel %vm975, %v971, inf
        %977 = vmin.xlane.f32.xlu0 %v976
        %v978 = vpop.xlane.xlu0 %977
        %v979 = vcvt.f32.s32 %v978
        %v980 = vcvt.f32.s32 %v974
        %v981 = vshll.u32 %v980, 16
        %v982 = vadd.s32 %v981, %v979
        %v983 = vsel %vm922, %v910, 2147483647
        %v984 = vand.u32 %v983, 65535
        %v985 = vshra.s32 %v983, 16
        %v986 = vcvt.s32.f32 %v984
        %v987 = vcvt.s32.f32 %v985
        %988 = vmin.xlane.f32.xlu0 %v987
        %v989 = vpop.xlane.xlu0 %988
        %vm990 = vcmp.eq.f32.partialorder %v987, %v989
        %v991 = vsel %vm990, %v986, inf
        %992 = vmin.xlane.f32.xlu0 %v991
        %v993 = vpop.xlane.xlu0 %992
        %v994 = vcvt.f32.s32 %v993
        %v995 = vcvt.f32.s32 %v989
        %v996 = vshll.u32 %v995, 16
        %v997 = vadd.s32 %v996, %v994
        %v998 = vsel %vm922, %v911, 2147483647
        %v999 = vand.u32 %v998, 65535
        %v1000 = vshra.s32 %v998, 16
        %v1001 = vcvt.s32.f32 %v999
        %v1002 = vcvt.s32.f32 %v1000
        %1003 = vmin.xlane.f32.xlu0 %v1002
        %v1004 = vpop.xlane.xlu0 %1003
        %vm1005 = vcmp.eq.f32.partialorder %v1002, %v1004
        %v1006 = vsel %vm1005, %v1001, inf
        %1007 = vmin.xlane.f32.xlu0 %v1006
        %v1008 = vpop.xlane.xlu0 %1007
        %v1009 = vcvt.f32.s32 %v1008
        %v1010 = vcvt.f32.s32 %v1004
        %v1011 = vshll.u32 %v1010, 16
        %v1012 = vadd.s32 %v1011, %v1009
        %v1013 = vsel %vm922, %v912, 2147483647
        %v1014 = vand.u32 %v1013, 65535
        %v1015 = vshra.s32 %v1013, 16
        %v1016 = vcvt.s32.f32 %v1014
        %v1017 = vcvt.s32.f32 %v1015
        %1018 = vmin.xlane.f32.xlu0 %v1017
        %v1019 = vpop.xlane.xlu0 %1018
        %vm1020 = vcmp.eq.f32.partialorder %v1017, %v1019
        %v1021 = vsel %vm1020, %v1016, inf
        %1022 = vmin.xlane.f32.xlu0 %v1021
        %v1023 = vpop.xlane.xlu0 %1022
        %v1024 = vcvt.f32.s32 %v1023
        %v1025 = vcvt.f32.s32 %v1019
        %v1026 = vshll.u32 %v1025, 16
        %v1027 = vadd.s32 %v1026, %v1024
        %v1028 = vsel %vm922, %v913, 2147483647
        %v1029 = vand.u32 %v1028, 65535
        %v1030 = vshra.s32 %v1028, 16
        %v1031 = vcvt.s32.f32 %v1029
        %v1032 = vcvt.s32.f32 %v1030
        %1033 = vmin.xlane.f32.xlu0 %v1032
        %v1034 = vpop.xlane.xlu0 %1033
        %vm1035 = vcmp.eq.f32.partialorder %v1032, %v1034
        %v1036 = vsel %vm1035, %v1031, inf
        %1037 = vmin.xlane.f32.xlu0 %v1036
        %v1038 = vpop.xlane.xlu0 %1037
        %v1039 = vcvt.f32.s32 %v1038
        %v1040 = vcvt.f32.s32 %v1034
        %v1041 = vshll.u32 %v1040, 16
        %v1042 = vadd.s32 %v1041, %v1039
        %v1043 = vsel %vm922, %v914, 2147483647
        %v1044 = vand.u32 %v1043, 65535
        %v1045 = vshra.s32 %v1043, 16
        %v1046 = vcvt.s32.f32 %v1044
        %v1047 = vcvt.s32.f32 %v1045
        %1048 = vmin.xlane.f32.xlu0 %v1047
        %v1049 = vpop.xlane.xlu0 %1048
        %vm1050 = vcmp.eq.f32.partialorder %v1047, %v1049
        %v1051 = vsel %vm1050, %v1046, inf
        %1052 = vmin.xlane.f32.xlu0 %v1051
        %v1053 = vpop.xlane.xlu0 %1052
        %v1054 = vcvt.f32.s32 %v1053
        %v1055 = vcvt.f32.s32 %v1049
        %v1056 = vshll.u32 %v1055, 16
        %v1057 = vadd.s32 %v1056, %v1054
        %v1058 = vsel %vm922, %v915, 2147483647
        %v1059 = vand.u32 %v1058, 65535
        %v1060 = vshra.s32 %v1058, 16
        %v1061 = vcvt.s32.f32 %v1059
        %v1062 = vcvt.s32.f32 %v1060
        %1063 = vmin.xlane.f32.xlu0 %v1062
        %v1064 = vpop.xlane.xlu0 %1063
        %vm1065 = vcmp.eq.f32.partialorder %v1062, %v1064
        %v1066 = vsel %vm1065, %v1061, inf
        %1067 = vmin.xlane.f32.xlu0 %v1066
        %v1068 = vpop.xlane.xlu0 %1067
        %v1069 = vcvt.f32.s32 %v1068
        %v1070 = vcvt.f32.s32 %v1064
        %v1071 = vshll.u32 %v1070, 16
        %v1072 = vadd.s32 %v1071, %v1069
        %v1073 = vsel %vm922, %v916, 2147483647
        %v1074 = vand.u32 %v1073, 65535
        %v1075 = vshra.s32 %v1073, 16
        %v1076 = vcvt.s32.f32 %v1074
        %v1077 = vcvt.s32.f32 %v1075
        %1078 = vmin.xlane.f32.xlu0 %v1077
        %v1079 = vpop.xlane.xlu0 %1078
        %vm1080 = vcmp.eq.f32.partialorder %v1077, %v1079
        %v1081 = vsel %vm1080, %v1076, inf
        %1082 = vmin.xlane.f32.xlu0 %v1081
        %v1083 = vpop.xlane.xlu0 %1082
        %v1084 = vcvt.f32.s32 %v1083
        %v1085 = vcvt.f32.s32 %v1079
        %v1086 = vshll.u32 %v1085, 16
        %v1087 = vadd.s32 %v1086, %v1084
        %v1088 = vsel %vm922, %v917, 2147483647
        %v1089 = vand.u32 %v1088, 65535
        %v1090 = vshra.s32 %v1088, 16
        %v1091 = vcvt.s32.f32 %v1089
        %v1092 = vcvt.s32.f32 %v1090
        %1093 = vmin.xlane.f32.xlu0 %v1092
        %v1094 = vpop.xlane.xlu0 %1093
        %vm1095 = vcmp.eq.f32.partialorder %v1092, %v1094
        %v1096 = vsel %vm1095, %v1091, inf
        %1097 = vmin.xlane.f32.xlu0 %v1096
        %v1098 = vpop.xlane.xlu0 %1097
        %v1099 = vcvt.f32.s32 %v1098
        %v1100 = vcvt.f32.s32 %v1094
        %v1101 = vshll.u32 %v1100, 16
        %v1102 = vadd.s32 %v1101, %v1099
        %v1103 = vsel %vm922, %v918, 2147483647
        %v1104 = vand.u32 %v1103, 65535
        %v1105 = vshra.s32 %v1103, 16
        %v1106 = vcvt.s32.f32 %v1104
        %v1107 = vcvt.s32.f32 %v1105
        %1108 = vmin.xlane.f32.xlu0 %v1107
        %v1109 = vpop.xlane.xlu0 %1108
        %vm1110 = vcmp.eq.f32.partialorder %v1107, %v1109
        %v1111 = vsel %vm1110, %v1106, inf
        %1112 = vmin.xlane.f32.xlu0 %v1111
        %v1113 = vpop.xlane.xlu0 %1112
        %v1114 = vcvt.f32.s32 %v1113
        %v1115 = vcvt.f32.s32 %v1109
        %v1116 = vshll.u32 %v1115, 16
        %v1117 = vadd.s32 %v1116, %v1114
        %v1118 = vsel %vm922, %v919, 2147483647
        %v1119 = vand.u32 %v1118, 65535
        %v1120 = vshra.s32 %v1118, 16
        %v1121 = vcvt.s32.f32 %v1119
        %v1122 = vcvt.s32.f32 %v1120
        %1123 = vmin.xlane.f32.xlu0 %v1122
        %v1124 = vpop.xlane.xlu0 %1123
        %vm1125 = vcmp.eq.f32.partialorder %v1122, %v1124
        %v1126 = vsel %vm1125, %v1121, inf
        %1127 = vmin.xlane.f32.xlu0 %v1126
        %v1128 = vpop.xlane.xlu0 %1127
        %v1129 = vcvt.f32.s32 %v1128
        %v1130 = vcvt.f32.s32 %v1124
        %v1131 = vshll.u32 %v1130, 16
        %v1132 = vadd.s32 %v1131, %v1129
        %v1133 = vsel %vm922, %v920, 2147483647
        %v1134 = vand.u32 %v1133, 65535
        %v1135 = vshra.s32 %v1133, 16
        %v1136 = vcvt.s32.f32 %v1134
        %v1137 = vcvt.s32.f32 %v1135
        %1138 = vmin.xlane.f32.xlu0 %v1137
        %v1139 = vpop.xlane.xlu0 %1138
        %vm1140 = vcmp.eq.f32.partialorder %v1137, %v1139
        %v1141 = vsel %vm1140, %v1136, inf
        %1142 = vmin.xlane.f32.xlu0 %v1141
        %v1143 = vpop.xlane.xlu0 %1142
        %v1144 = vcvt.f32.s32 %v1143
        %v1145 = vcvt.f32.s32 %v1139
        %v1146 = vshll.u32 %v1145, 16
        %v1147 = vadd.s32 %v1146, %v1144
        %v1148 = vsel %vm922, %v921, 2147483647
        %v1149 = vand.u32 %v1148, 65535
        %v1150 = vshra.s32 %v1148, 16
        %v1151 = vcvt.s32.f32 %v1149
        %v1152 = vcvt.s32.f32 %v1150
        %1153 = vmin.xlane.f32.xlu0 %v1152
        %v1154 = vpop.xlane.xlu0 %1153
        %vm1155 = vcmp.eq.f32.partialorder %v1152, %v1154
        %v1156 = vsel %vm1155, %v1151, inf
        %1157 = vmin.xlane.f32.xlu0 %v1156
        %v1158 = vpop.xlane.xlu0 %1157
        %v1159 = vcvt.f32.s32 %v1158
        %v1160 = vcvt.f32.s32 %v1154
        %v1161 = vshll.u32 %v1160, 16
        %v1162 = vadd.s32 %v1161, %v1159
        %v1163 = vand.u32 %v937, 63
        %v1164 = vand.u32 %v952, 63
        %v1165 = vand.u32 %v967, 63
        %v1166 = vand.u32 %v982, 63
        %v1167 = vand.u32 %v997, 63
        %v1168 = vand.u32 %v1012, 63
        %v1169 = vand.u32 %v1027, 63
        %v1170 = vand.u32 %v1042, 63
        %v1171 = vand.u32 %v1057, 63
        %v1172 = vand.u32 %v1072, 63
        %v1173 = vand.u32 %v1087, 63
        %v1174 = vand.u32 %v1102, 63
        %v1175 = vand.u32 %v1117, 63
        %v1176 = vand.u32 %v1132, 63
        %v1177 = vand.u32 %v1147, 63
        %v1178 = vand.u32 %v1162, 63
        %vm1179 = vcmp.eq.s32.totalorder %v873, %v1163
        %vm1180 = vcmp.eq.s32.totalorder %v873, %v1164
        %vm1181 = vcmp.eq.s32.totalorder %v873, %v1165
        %vm1182 = vcmp.eq.s32.totalorder %v873, %v1166
        %vm1183 = vcmp.eq.s32.totalorder %v873, %v1167
        %vm1184 = vcmp.eq.s32.totalorder %v873, %v1168
        %vm1185 = vcmp.eq.s32.totalorder %v873, %v1169
        %vm1186 = vcmp.eq.s32.totalorder %v873, %v1170
        %vm1187 = vcmp.eq.s32.totalorder %v873, %v1171
        %vm1188 = vcmp.eq.s32.totalorder %v873, %v1172
        %vm1189 = vcmp.eq.s32.totalorder %v873, %v1173
        %vm1190 = vcmp.eq.s32.totalorder %v873, %v1174
        %vm1191 = vcmp.eq.s32.totalorder %v873, %v1175
        %vm1192 = vcmp.eq.s32.totalorder %v873, %v1176
        %vm1193 = vcmp.eq.s32.totalorder %v873, %v1177
        %vm1194 = vcmp.eq.s32.totalorder %v873, %v1178
        %v1195 = vsel %vm1179, 1.0, 0.0
        %v1196 = vsel %vm1180, 1.0, 0.0
        %v1197 = vsel %vm1181, 1.0, 0.0
        %v1198 = vsel %vm1182, 1.0, 0.0
        %v1199 = vsel %vm1183, 1.0, 0.0
        %v1200 = vsel %vm1184, 1.0, 0.0
        %v1201 = vsel %vm1185, 1.0, 0.0
        %v1202 = vsel %vm1186, 1.0, 0.0
        %v1203 = vsel %vm1187, 1.0, 0.0
        %v1204 = vsel %vm1188, 1.0, 0.0
        %v1205 = vsel %vm1189, 1.0, 0.0
        %v1206 = vsel %vm1190, 1.0, 0.0
        %v1207 = vsel %vm1191, 1.0, 0.0
        %v1208 = vsel %vm1192, 1.0, 0.0
        %v1209 = vsel %vm1193, 1.0, 0.0
        %v1210 = vsel %vm1194, 1.0, 0.0
        %v1211 = vsel %vm1179, 2139095039, %v906
        %v1212 = vsel %vm1180, 2139095039, %v907
        %v1213 = vsel %vm1181, 2139095039, %v908
        %v1214 = vsel %vm1182, 2139095039, %v909
        %v1215 = vsel %vm1183, 2139095039, %v910
        %v1216 = vsel %vm1184, 2139095039, %v911
        %v1217 = vsel %vm1185, 2139095039, %v912
        %v1218 = vsel %vm1186, 2139095039, %v913
        %v1219 = vsel %vm1187, 2139095039, %v914
        %v1220 = vsel %vm1188, 2139095039, %v915
        %v1221 = vsel %vm1189, 2139095039, %v916
        %v1222 = vsel %vm1190, 2139095039, %v917
        %v1223 = vsel %vm1191, 2139095039, %v918
        %v1224 = vsel %vm1192, 2139095039, %v919
        %v1225 = vsel %vm1193, 2139095039, %v920
        %v1226 = vsel %vm1194, 2139095039, %v921
        %v1227 = vsel %vm922, %v1211, 2147483647
        %v1228 = vand.u32 %v1227, 65535
        %v1229 = vshra.s32 %v1227, 16
        %v1230 = vcvt.s32.f32 %v1228
        %v1231 = vcvt.s32.f32 %v1229
        %1232 = vmin.xlane.f32.xlu0 %v1231
        %v1233 = vpop.xlane.xlu0 %1232
        %vm1234 = vcmp.eq.f32.partialorder %v1231, %v1233
        %v1235 = vsel %vm1234, %v1230, inf
        %1236 = vmin.xlane.f32.xlu0 %v1235
        %v1237 = vpop.xlane.xlu0 %1236
        %v1238 = vcvt.f32.s32 %v1237
        %v1239 = vcvt.f32.s32 %v1233
        %v1240 = vshll.u32 %v1239, 16
        %v1241 = vadd.s32 %v1240, %v1238
        %v1242 = vsel %vm922, %v1212, 2147483647
        %v1243 = vand.u32 %v1242, 65535
        %v1244 = vshra.s32 %v1242, 16
        %v1245 = vcvt.s32.f32 %v1243
        %v1246 = vcvt.s32.f32 %v1244
        %1247 = vmin.xlane.f32.xlu0 %v1246
        %v1248 = vpop.xlane.xlu0 %1247
        %vm1249 = vcmp.eq.f32.partialorder %v1246, %v1248
        %v1250 = vsel %vm1249, %v1245, inf
        %1251 = vmin.xlane.f32.xlu0 %v1250
        %v1252 = vpop.xlane.xlu0 %1251
        %v1253 = vcvt.f32.s32 %v1252
        %v1254 = vcvt.f32.s32 %v1248
        %v1255 = vshll.u32 %v1254, 16
        %v1256 = vadd.s32 %v1255, %v1253
        %v1257 = vsel %vm922, %v1213, 2147483647
        %v1258 = vand.u32 %v1257, 65535
        %v1259 = vshra.s32 %v1257, 16
        %v1260 = vcvt.s32.f32 %v1258
        %v1261 = vcvt.s32.f32 %v1259
        %1262 = vmin.xlane.f32.xlu0 %v1261
        %v1263 = vpop.xlane.xlu0 %1262
        %vm1264 = vcmp.eq.f32.partialorder %v1261, %v1263
        %v1265 = vsel %vm1264, %v1260, inf
        %1266 = vmin.xlane.f32.xlu0 %v1265
        %v1267 = vpop.xlane.xlu0 %1266
        %v1268 = vcvt.f32.s32 %v1267
        %v1269 = vcvt.f32.s32 %v1263
        %v1270 = vshll.u32 %v1269, 16
        %v1271 = vadd.s32 %v1270, %v1268
        %v1272 = vsel %vm922, %v1214, 2147483647
        %v1273 = vand.u32 %v1272, 65535
        %v1274 = vshra.s32 %v1272, 16
        %v1275 = vcvt.s32.f32 %v1273
        %v1276 = vcvt.s32.f32 %v1274
        %1277 = vmin.xlane.f32.xlu0 %v1276
        %v1278 = vpop.xlane.xlu0 %1277
        %vm1279 = vcmp.eq.f32.partialorder %v1276, %v1278
        %v1280 = vsel %vm1279, %v1275, inf
        %1281 = vmin.xlane.f32.xlu0 %v1280
        %v1282 = vpop.xlane.xlu0 %1281
        %v1283 = vcvt.f32.s32 %v1282
        %v1284 = vcvt.f32.s32 %v1278
        %v1285 = vshll.u32 %v1284, 16
        %v1286 = vadd.s32 %v1285, %v1283
        %v1287 = vsel %vm922, %v1215, 2147483647
        %v1288 = vand.u32 %v1287, 65535
        %v1289 = vshra.s32 %v1287, 16
        %v1290 = vcvt.s32.f32 %v1288
        %v1291 = vcvt.s32.f32 %v1289
        %1292 = vmin.xlane.f32.xlu0 %v1291
        %v1293 = vpop.xlane.xlu0 %1292
        %vm1294 = vcmp.eq.f32.partialorder %v1291, %v1293
        %v1295 = vsel %vm1294, %v1290, inf
        %1296 = vmin.xlane.f32.xlu0 %v1295
        %v1297 = vpop.xlane.xlu0 %1296
        %v1298 = vcvt.f32.s32 %v1297
        %v1299 = vcvt.f32.s32 %v1293
        %v1300 = vshll.u32 %v1299, 16
        %v1301 = vadd.s32 %v1300, %v1298
        %v1302 = vsel %vm922, %v1216, 2147483647
        %v1303 = vand.u32 %v1302, 65535
        %v1304 = vshra.s32 %v1302, 16
        %v1305 = vcvt.s32.f32 %v1303
        %v1306 = vcvt.s32.f32 %v1304
        %1307 = vmin.xlane.f32.xlu0 %v1306
        %v1308 = vpop.xlane.xlu0 %1307
        %vm1309 = vcmp.eq.f32.partialorder %v1306, %v1308
        %v1310 = vsel %vm1309, %v1305, inf
        %1311 = vmin.xlane.f32.xlu0 %v1310
        %v1312 = vpop.xlane.xlu0 %1311
        %v1313 = vcvt.f32.s32 %v1312
        %v1314 = vcvt.f32.s32 %v1308
        %v1315 = vshll.u32 %v1314, 16
        %v1316 = vadd.s32 %v1315, %v1313
        %v1317 = vsel %vm922, %v1217, 2147483647
        %v1318 = vand.u32 %v1317, 65535
        %v1319 = vshra.s32 %v1317, 16
        %v1320 = vcvt.s32.f32 %v1318
        %v1321 = vcvt.s32.f32 %v1319
        %1322 = vmin.xlane.f32.xlu0 %v1321
        %v1323 = vpop.xlane.xlu0 %1322
        %vm1324 = vcmp.eq.f32.partialorder %v1321, %v1323
        %v1325 = vsel %vm1324, %v1320, inf
        %1326 = vmin.xlane.f32.xlu0 %v1325
        %v1327 = vpop.xlane.xlu0 %1326
        %v1328 = vcvt.f32.s32 %v1327
        %v1329 = vcvt.f32.s32 %v1323
        %v1330 = vshll.u32 %v1329, 16
        %v1331 = vadd.s32 %v1330, %v1328
        %v1332 = vsel %vm922, %v1218, 2147483647
        %v1333 = vand.u32 %v1332, 65535
        %v1334 = vshra.s32 %v1332, 16
        %v1335 = vcvt.s32.f32 %v1333
        %v1336 = vcvt.s32.f32 %v1334
        %1337 = vmin.xlane.f32.xlu0 %v1336
        %v1338 = vpop.xlane.xlu0 %1337
        %vm1339 = vcmp.eq.f32.partialorder %v1336, %v1338
        %v1340 = vsel %vm1339, %v1335, inf
        %1341 = vmin.xlane.f32.xlu0 %v1340
        %v1342 = vpop.xlane.xlu0 %1341
        %v1343 = vcvt.f32.s32 %v1342
        %v1344 = vcvt.f32.s32 %v1338
        %v1345 = vshll.u32 %v1344, 16
        %v1346 = vadd.s32 %v1345, %v1343
        %v1347 = vsel %vm922, %v1219, 2147483647
        %v1348 = vand.u32 %v1347, 65535
        %v1349 = vshra.s32 %v1347, 16
        %v1350 = vcvt.s32.f32 %v1348
        %v1351 = vcvt.s32.f32 %v1349
        %1352 = vmin.xlane.f32.xlu0 %v1351
        %v1353 = vpop.xlane.xlu0 %1352
        %vm1354 = vcmp.eq.f32.partialorder %v1351, %v1353
        %v1355 = vsel %vm1354, %v1350, inf
        %1356 = vmin.xlane.f32.xlu0 %v1355
        %v1357 = vpop.xlane.xlu0 %1356
        %v1358 = vcvt.f32.s32 %v1357
        %v1359 = vcvt.f32.s32 %v1353
        %v1360 = vshll.u32 %v1359, 16
        %v1361 = vadd.s32 %v1360, %v1358
        %v1362 = vsel %vm922, %v1220, 2147483647
        %v1363 = vand.u32 %v1362, 65535
        %v1364 = vshra.s32 %v1362, 16
        %v1365 = vcvt.s32.f32 %v1363
        %v1366 = vcvt.s32.f32 %v1364
        %1367 = vmin.xlane.f32.xlu0 %v1366
        %v1368 = vpop.xlane.xlu0 %1367
        %vm1369 = vcmp.eq.f32.partialorder %v1366, %v1368
        %v1370 = vsel %vm1369, %v1365, inf
        %1371 = vmin.xlane.f32.xlu0 %v1370
        %v1372 = vpop.xlane.xlu0 %1371
        %v1373 = vcvt.f32.s32 %v1372
        %v1374 = vcvt.f32.s32 %v1368
        %v1375 = vshll.u32 %v1374, 16
        %v1376 = vadd.s32 %v1375, %v1373
        %v1377 = vsel %vm922, %v1221, 2147483647
        %v1378 = vand.u32 %v1377, 65535
        %v1379 = vshra.s32 %v1377, 16
        %v1380 = vcvt.s32.f32 %v1378
        %v1381 = vcvt.s32.f32 %v1379
        %1382 = vmin.xlane.f32.xlu0 %v1381
        %v1383 = vpop.xlane.xlu0 %1382
        %vm1384 = vcmp.eq.f32.partialorder %v1381, %v1383
        %v1385 = vsel %vm1384, %v1380, inf
        %1386 = vmin.xlane.f32.xlu0 %v1385
        %v1387 = vpop.xlane.xlu0 %1386
        %v1388 = vcvt.f32.s32 %v1387
        %v1389 = vcvt.f32.s32 %v1383
        %v1390 = vshll.u32 %v1389, 16
        %v1391 = vadd.s32 %v1390, %v1388
        %v1392 = vsel %vm922, %v1222, 2147483647
        %v1393 = vand.u32 %v1392, 65535
        %v1394 = vshra.s32 %v1392, 16
        %v1395 = vcvt.s32.f32 %v1393
        %v1396 = vcvt.s32.f32 %v1394
        %1397 = vmin.xlane.f32.xlu0 %v1396
        %v1398 = vpop.xlane.xlu0 %1397
        %vm1399 = vcmp.eq.f32.partialorder %v1396, %v1398
        %v1400 = vsel %vm1399, %v1395, inf
        %1401 = vmin.xlane.f32.xlu0 %v1400
        %v1402 = vpop.xlane.xlu0 %1401
        %v1403 = vcvt.f32.s32 %v1402
        %v1404 = vcvt.f32.s32 %v1398
        %v1405 = vshll.u32 %v1404, 16
        %v1406 = vadd.s32 %v1405, %v1403
        %v1407 = vsel %vm922, %v1223, 2147483647
        %v1408 = vand.u32 %v1407, 65535
        %v1409 = vshra.s32 %v1407, 16
        %v1410 = vcvt.s32.f32 %v1408
        %v1411 = vcvt.s32.f32 %v1409
        %1412 = vmin.xlane.f32.xlu0 %v1411
        %v1413 = vpop.xlane.xlu0 %1412
        %vm1414 = vcmp.eq.f32.partialorder %v1411, %v1413
        %v1415 = vsel %vm1414, %v1410, inf
        %1416 = vmin.xlane.f32.xlu0 %v1415
        %v1417 = vpop.xlane.xlu0 %1416
        %v1418 = vcvt.f32.s32 %v1417
        %v1419 = vcvt.f32.s32 %v1413
        %v1420 = vshll.u32 %v1419, 16
        %v1421 = vadd.s32 %v1420, %v1418
        %v1422 = vsel %vm922, %v1224, 2147483647
        %v1423 = vand.u32 %v1422, 65535
        %v1424 = vshra.s32 %v1422, 16
        %v1425 = vcvt.s32.f32 %v1423
        %v1426 = vcvt.s32.f32 %v1424
        %1427 = vmin.xlane.f32.xlu0 %v1426
        %v1428 = vpop.xlane.xlu0 %1427
        %vm1429 = vcmp.eq.f32.partialorder %v1426, %v1428
        %v1430 = vsel %vm1429, %v1425, inf
        %1431 = vmin.xlane.f32.xlu0 %v1430
        %v1432 = vpop.xlane.xlu0 %1431
        %v1433 = vcvt.f32.s32 %v1432
        %v1434 = vcvt.f32.s32 %v1428
        %v1435 = vshll.u32 %v1434, 16
        %v1436 = vadd.s32 %v1435, %v1433
        %v1437 = vsel %vm922, %v1225, 2147483647
        %v1438 = vand.u32 %v1437, 65535
        %v1439 = vshra.s32 %v1437, 16
        %v1440 = vcvt.s32.f32 %v1438
        %v1441 = vcvt.s32.f32 %v1439
        %1442 = vmin.xlane.f32.xlu0 %v1441
        %v1443 = vpop.xlane.xlu0 %1442
        %vm1444 = vcmp.eq.f32.partialorder %v1441, %v1443
        %v1445 = vsel %vm1444, %v1440, inf
        %1446 = vmin.xlane.f32.xlu0 %v1445
        %v1447 = vpop.xlane.xlu0 %1446
        %v1448 = vcvt.f32.s32 %v1447
        %v1449 = vcvt.f32.s32 %v1443
        %v1450 = vshll.u32 %v1449, 16
        %v1451 = vadd.s32 %v1450, %v1448
        %v1452 = vsel %vm922, %v1226, 2147483647
        %v1453 = vand.u32 %v1452, 65535
        %v1454 = vshra.s32 %v1452, 16
        %v1455 = vcvt.s32.f32 %v1453
        %v1456 = vcvt.s32.f32 %v1454
        %1457 = vmin.xlane.f32.xlu0 %v1456
        %v1458 = vpop.xlane.xlu0 %1457
        %vm1459 = vcmp.eq.f32.partialorder %v1456, %v1458
        %v1460 = vsel %vm1459, %v1455, inf
        %1461 = vmin.xlane.f32.xlu0 %v1460
        %v1462 = vpop.xlane.xlu0 %1461
        %v1463 = vcvt.f32.s32 %v1462
        %v1464 = vcvt.f32.s32 %v1458
        %v1465 = vshll.u32 %v1464, 16
        %v1466 = vadd.s32 %v1465, %v1463
        %v1467 = vand.u32 %v1241, 63
        %v1468 = vand.u32 %v1256, 63
        %v1469 = vand.u32 %v1271, 63
        %v1470 = vand.u32 %v1286, 63
        %v1471 = vand.u32 %v1301, 63
        %v1472 = vand.u32 %v1316, 63
        %v1473 = vand.u32 %v1331, 63
        %v1474 = vand.u32 %v1346, 63
        %v1475 = vand.u32 %v1361, 63
        %v1476 = vand.u32 %v1376, 63
        %v1477 = vand.u32 %v1391, 63
        %v1478 = vand.u32 %v1406, 63
        %v1479 = vand.u32 %v1421, 63
        %v1480 = vand.u32 %v1436, 63
        %v1481 = vand.u32 %v1451, 63
        %v1482 = vand.u32 %v1466, 63
        %vm1483 = vcmp.eq.s32.totalorder %v873, %v1467
        %vm1484 = vcmp.eq.s32.totalorder %v873, %v1468
        %vm1485 = vcmp.eq.s32.totalorder %v873, %v1469
        %vm1486 = vcmp.eq.s32.totalorder %v873, %v1470
        %vm1487 = vcmp.eq.s32.totalorder %v873, %v1471
        %vm1488 = vcmp.eq.s32.totalorder %v873, %v1472
        %vm1489 = vcmp.eq.s32.totalorder %v873, %v1473
        %vm1490 = vcmp.eq.s32.totalorder %v873, %v1474
        %vm1491 = vcmp.eq.s32.totalorder %v873, %v1475
        %vm1492 = vcmp.eq.s32.totalorder %v873, %v1476
        %vm1493 = vcmp.eq.s32.totalorder %v873, %v1477
        %vm1494 = vcmp.eq.s32.totalorder %v873, %v1478
        %vm1495 = vcmp.eq.s32.totalorder %v873, %v1479
        %vm1496 = vcmp.eq.s32.totalorder %v873, %v1480
        %vm1497 = vcmp.eq.s32.totalorder %v873, %v1481
        %vm1498 = vcmp.eq.s32.totalorder %v873, %v1482
        %v1499 = vsel %vm1483, 1.0, %v1195
        %v1500 = vsel %vm1484, 1.0, %v1196
        %v1501 = vsel %vm1485, 1.0, %v1197
        %v1502 = vsel %vm1486, 1.0, %v1198
        %v1503 = vsel %vm1487, 1.0, %v1199
        %v1504 = vsel %vm1488, 1.0, %v1200
        %v1505 = vsel %vm1489, 1.0, %v1201
        %v1506 = vsel %vm1490, 1.0, %v1202
        %v1507 = vsel %vm1491, 1.0, %v1203
        %v1508 = vsel %vm1492, 1.0, %v1204
        %v1509 = vsel %vm1493, 1.0, %v1205
        %v1510 = vsel %vm1494, 1.0, %v1206
        %v1511 = vsel %vm1495, 1.0, %v1207
        %v1512 = vsel %vm1496, 1.0, %v1208
        %v1513 = vsel %vm1497, 1.0, %v1209
        %v1514 = vsel %vm1498, 1.0, %v1210
        %v1515 = vsel %vm1483, 2139095039, %v1211
        %v1516 = vsel %vm1484, 2139095039, %v1212
        %v1517 = vsel %vm1485, 2139095039, %v1213
        %v1518 = vsel %vm1486, 2139095039, %v1214
        %v1519 = vsel %vm1487, 2139095039, %v1215
        %v1520 = vsel %vm1488, 2139095039, %v1216
        %v1521 = vsel %vm1489, 2139095039, %v1217
        %v1522 = vsel %vm1490, 2139095039, %v1218
        %v1523 = vsel %vm1491, 2139095039, %v1219
        %v1524 = vsel %vm1492, 2139095039, %v1220
        %v1525 = vsel %vm1493, 2139095039, %v1221
        %v1526 = vsel %vm1494, 2139095039, %v1222
        %v1527 = vsel %vm1495, 2139095039, %v1223
        %v1528 = vsel %vm1496, 2139095039, %v1224
        %v1529 = vsel %vm1497, 2139095039, %v1225
        %v1530 = vsel %vm1498, 2139095039, %v1226
        %v1531 = vsel %vm922, %v1515, 2147483647
        %v1532 = vand.u32 %v1531, 65535
        %v1533 = vshra.s32 %v1531, 16
        %v1534 = vcvt.s32.f32 %v1532
        %v1535 = vcvt.s32.f32 %v1533
        %1536 = vmin.xlane.f32.xlu0 %v1535
        %v1537 = vpop.xlane.xlu0 %1536
        %vm1538 = vcmp.eq.f32.partialorder %v1535, %v1537
        %v1539 = vsel %vm1538, %v1534, inf
        %1540 = vmin.xlane.f32.xlu0 %v1539
        %v1541 = vpop.xlane.xlu0 %1540
        %v1542 = vcvt.f32.s32 %v1541
        %v1543 = vcvt.f32.s32 %v1537
        %v1544 = vshll.u32 %v1543, 16
        %v1545 = vadd.s32 %v1544, %v1542
        %v1546 = vsel %vm922, %v1516, 2147483647
        %v1547 = vand.u32 %v1546, 65535
        %v1548 = vshra.s32 %v1546, 16
        %v1549 = vcvt.s32.f32 %v1547
        %v1550 = vcvt.s32.f32 %v1548
        %1551 = vmin.xlane.f32.xlu0 %v1550
        %v1552 = vpop.xlane.xlu0 %1551
        %vm1553 = vcmp.eq.f32.partialorder %v1550, %v1552
        %v1554 = vsel %vm1553, %v1549, inf
        %1555 = vmin.xlane.f32.xlu0 %v1554
        %v1556 = vpop.xlane.xlu0 %1555
        %v1557 = vcvt.f32.s32 %v1556
        %v1558 = vcvt.f32.s32 %v1552
        %v1559 = vshll.u32 %v1558, 16
        %v1560 = vadd.s32 %v1559, %v1557
        %v1561 = vsel %vm922, %v1517, 2147483647
        %v1562 = vand.u32 %v1561, 65535
        %v1563 = vshra.s32 %v1561, 16
        %v1564 = vcvt.s32.f32 %v1562
        %v1565 = vcvt.s32.f32 %v1563
        %1566 = vmin.xlane.f32.xlu0 %v1565
        %v1567 = vpop.xlane.xlu0 %1566
        %vm1568 = vcmp.eq.f32.partialorder %v1565, %v1567
        %v1569 = vsel %vm1568, %v1564, inf
        %1570 = vmin.xlane.f32.xlu0 %v1569
        %v1571 = vpop.xlane.xlu0 %1570
        %v1572 = vcvt.f32.s32 %v1571
        %v1573 = vcvt.f32.s32 %v1567
        %v1574 = vshll.u32 %v1573, 16
        %v1575 = vadd.s32 %v1574, %v1572
        %v1576 = vsel %vm922, %v1518, 2147483647
        %v1577 = vand.u32 %v1576, 65535
        %v1578 = vshra.s32 %v1576, 16
        %v1579 = vcvt.s32.f32 %v1577
        %v1580 = vcvt.s32.f32 %v1578
        %1581 = vmin.xlane.f32.xlu0 %v1580
        %v1582 = vpop.xlane.xlu0 %1581
        %vm1583 = vcmp.eq.f32.partialorder %v1580, %v1582
        %v1584 = vsel %vm1583, %v1579, inf
        %1585 = vmin.xlane.f32.xlu0 %v1584
        %v1586 = vpop.xlane.xlu0 %1585
        %v1587 = vcvt.f32.s32 %v1586
        %v1588 = vcvt.f32.s32 %v1582
        %v1589 = vshll.u32 %v1588, 16
        %v1590 = vadd.s32 %v1589, %v1587
        %v1591 = vsel %vm922, %v1519, 2147483647
        %v1592 = vand.u32 %v1591, 65535
        %v1593 = vshra.s32 %v1591, 16
        %v1594 = vcvt.s32.f32 %v1592
        %v1595 = vcvt.s32.f32 %v1593
        %1596 = vmin.xlane.f32.xlu0 %v1595
        %v1597 = vpop.xlane.xlu0 %1596
        %vm1598 = vcmp.eq.f32.partialorder %v1595, %v1597
        %v1599 = vsel %vm1598, %v1594, inf
        %1600 = vmin.xlane.f32.xlu0 %v1599
        %v1601 = vpop.xlane.xlu0 %1600
        %v1602 = vcvt.f32.s32 %v1601
        %v1603 = vcvt.f32.s32 %v1597
        %v1604 = vshll.u32 %v1603, 16
        %v1605 = vadd.s32 %v1604, %v1602
        %v1606 = vsel %vm922, %v1520, 2147483647
        %v1607 = vand.u32 %v1606, 65535
        %v1608 = vshra.s32 %v1606, 16
        %v1609 = vcvt.s32.f32 %v1607
        %v1610 = vcvt.s32.f32 %v1608
        %1611 = vmin.xlane.f32.xlu0 %v1610
        %v1612 = vpop.xlane.xlu0 %1611
        %vm1613 = vcmp.eq.f32.partialorder %v1610, %v1612
        %v1614 = vsel %vm1613, %v1609, inf
        %1615 = vmin.xlane.f32.xlu0 %v1614
        %v1616 = vpop.xlane.xlu0 %1615
        %v1617 = vcvt.f32.s32 %v1616
        %v1618 = vcvt.f32.s32 %v1612
        %v1619 = vshll.u32 %v1618, 16
        %v1620 = vadd.s32 %v1619, %v1617
        %v1621 = vsel %vm922, %v1521, 2147483647
        %v1622 = vand.u32 %v1621, 65535
        %v1623 = vshra.s32 %v1621, 16
        %v1624 = vcvt.s32.f32 %v1622
        %v1625 = vcvt.s32.f32 %v1623
        %1626 = vmin.xlane.f32.xlu0 %v1625
        %v1627 = vpop.xlane.xlu0 %1626
        %vm1628 = vcmp.eq.f32.partialorder %v1625, %v1627
        %v1629 = vsel %vm1628, %v1624, inf
        %1630 = vmin.xlane.f32.xlu0 %v1629
        %v1631 = vpop.xlane.xlu0 %1630
        %v1632 = vcvt.f32.s32 %v1631
        %v1633 = vcvt.f32.s32 %v1627
        %v1634 = vshll.u32 %v1633, 16
        %v1635 = vadd.s32 %v1634, %v1632
        %v1636 = vsel %vm922, %v1522, 2147483647
        %v1637 = vand.u32 %v1636, 65535
        %v1638 = vshra.s32 %v1636, 16
        %v1639 = vcvt.s32.f32 %v1637
        %v1640 = vcvt.s32.f32 %v1638
        %1641 = vmin.xlane.f32.xlu0 %v1640
        %v1642 = vpop.xlane.xlu0 %1641
        %vm1643 = vcmp.eq.f32.partialorder %v1640, %v1642
        %v1644 = vsel %vm1643, %v1639, inf
        %1645 = vmin.xlane.f32.xlu0 %v1644
        %v1646 = vpop.xlane.xlu0 %1645
        %v1647 = vcvt.f32.s32 %v1646
        %v1648 = vcvt.f32.s32 %v1642
        %v1649 = vshll.u32 %v1648, 16
        %v1650 = vadd.s32 %v1649, %v1647
        %v1651 = vsel %vm922, %v1523, 2147483647
        %v1652 = vand.u32 %v1651, 65535
        %v1653 = vshra.s32 %v1651, 16
        %v1654 = vcvt.s32.f32 %v1652
        %v1655 = vcvt.s32.f32 %v1653
        %1656 = vmin.xlane.f32.xlu0 %v1655
        %v1657 = vpop.xlane.xlu0 %1656
        %vm1658 = vcmp.eq.f32.partialorder %v1655, %v1657
        %v1659 = vsel %vm1658, %v1654, inf
        %1660 = vmin.xlane.f32.xlu0 %v1659
        %v1661 = vpop.xlane.xlu0 %1660
        %v1662 = vcvt.f32.s32 %v1661
        %v1663 = vcvt.f32.s32 %v1657
        %v1664 = vshll.u32 %v1663, 16
        %v1665 = vadd.s32 %v1664, %v1662
        %v1666 = vsel %vm922, %v1524, 2147483647
        %v1667 = vand.u32 %v1666, 65535
        %v1668 = vshra.s32 %v1666, 16
        %v1669 = vcvt.s32.f32 %v1667
        %v1670 = vcvt.s32.f32 %v1668
        %1671 = vmin.xlane.f32.xlu0 %v1670
        %v1672 = vpop.xlane.xlu0 %1671
        %vm1673 = vcmp.eq.f32.partialorder %v1670, %v1672
        %v1674 = vsel %vm1673, %v1669, inf
        %1675 = vmin.xlane.f32.xlu0 %v1674
        %v1676 = vpop.xlane.xlu0 %1675
        %v1677 = vcvt.f32.s32 %v1676
        %v1678 = vcvt.f32.s32 %v1672
        %v1679 = vshll.u32 %v1678, 16
        %v1680 = vadd.s32 %v1679, %v1677
        %v1681 = vsel %vm922, %v1525, 2147483647
        %v1682 = vand.u32 %v1681, 65535
        %v1683 = vshra.s32 %v1681, 16
        %v1684 = vcvt.s32.f32 %v1682
        %v1685 = vcvt.s32.f32 %v1683
        %1686 = vmin.xlane.f32.xlu0 %v1685
        %v1687 = vpop.xlane.xlu0 %1686
        %vm1688 = vcmp.eq.f32.partialorder %v1685, %v1687
        %v1689 = vsel %vm1688, %v1684, inf
        %1690 = vmin.xlane.f32.xlu0 %v1689
        %v1691 = vpop.xlane.xlu0 %1690
        %v1692 = vcvt.f32.s32 %v1691
        %v1693 = vcvt.f32.s32 %v1687
        %v1694 = vshll.u32 %v1693, 16
        %v1695 = vadd.s32 %v1694, %v1692
        %v1696 = vsel %vm922, %v1526, 2147483647
        %v1697 = vand.u32 %v1696, 65535
        %v1698 = vshra.s32 %v1696, 16
        %v1699 = vcvt.s32.f32 %v1697
        %v1700 = vcvt.s32.f32 %v1698
        %1701 = vmin.xlane.f32.xlu0 %v1700
        %v1702 = vpop.xlane.xlu0 %1701
        %vm1703 = vcmp.eq.f32.partialorder %v1700, %v1702
        %v1704 = vsel %vm1703, %v1699, inf
        %1705 = vmin.xlane.f32.xlu0 %v1704
        %v1706 = vpop.xlane.xlu0 %1705
        %v1707 = vcvt.f32.s32 %v1706
        %v1708 = vcvt.f32.s32 %v1702
        %v1709 = vshll.u32 %v1708, 16
        %v1710 = vadd.s32 %v1709, %v1707
        %v1711 = vsel %vm922, %v1527, 2147483647
        %v1712 = vand.u32 %v1711, 65535
        %v1713 = vshra.s32 %v1711, 16
        %v1714 = vcvt.s32.f32 %v1712
        %v1715 = vcvt.s32.f32 %v1713
        %1716 = vmin.xlane.f32.xlu0 %v1715
        %v1717 = vpop.xlane.xlu0 %1716
        %vm1718 = vcmp.eq.f32.partialorder %v1715, %v1717
        %v1719 = vsel %vm1718, %v1714, inf
        %1720 = vmin.xlane.f32.xlu0 %v1719
        %v1721 = vpop.xlane.xlu0 %1720
        %v1722 = vcvt.f32.s32 %v1721
        %v1723 = vcvt.f32.s32 %v1717
        %v1724 = vshll.u32 %v1723, 16
        %v1725 = vadd.s32 %v1724, %v1722
        %v1726 = vsel %vm922, %v1528, 2147483647
        %v1727 = vand.u32 %v1726, 65535
        %v1728 = vshra.s32 %v1726, 16
        %v1729 = vcvt.s32.f32 %v1727
        %v1730 = vcvt.s32.f32 %v1728
        %1731 = vmin.xlane.f32.xlu0 %v1730
        %v1732 = vpop.xlane.xlu0 %1731
        %vm1733 = vcmp.eq.f32.partialorder %v1730, %v1732
        %v1734 = vsel %vm1733, %v1729, inf
        %1735 = vmin.xlane.f32.xlu0 %v1734
        %v1736 = vpop.xlane.xlu0 %1735
        %v1737 = vcvt.f32.s32 %v1736
        %v1738 = vcvt.f32.s32 %v1732
        %v1739 = vshll.u32 %v1738, 16
        %v1740 = vadd.s32 %v1739, %v1737
        %v1741 = vsel %vm922, %v1529, 2147483647
        %v1742 = vand.u32 %v1741, 65535
        %v1743 = vshra.s32 %v1741, 16
        %v1744 = vcvt.s32.f32 %v1742
        %v1745 = vcvt.s32.f32 %v1743
        %1746 = vmin.xlane.f32.xlu0 %v1745
        %v1747 = vpop.xlane.xlu0 %1746
        %vm1748 = vcmp.eq.f32.partialorder %v1745, %v1747
        %v1749 = vsel %vm1748, %v1744, inf
        %1750 = vmin.xlane.f32.xlu0 %v1749
        %v1751 = vpop.xlane.xlu0 %1750
        %v1752 = vcvt.f32.s32 %v1751
        %v1753 = vcvt.f32.s32 %v1747
        %v1754 = vshll.u32 %v1753, 16
        %v1755 = vadd.s32 %v1754, %v1752
        %v1756 = vsel %vm922, %v1530, 2147483647
        %v1757 = vand.u32 %v1756, 65535
        %v1758 = vshra.s32 %v1756, 16
        %v1759 = vcvt.s32.f32 %v1757
        %v1760 = vcvt.s32.f32 %v1758
        %1761 = vmin.xlane.f32.xlu0 %v1760
        %v1762 = vpop.xlane.xlu0 %1761
        %vm1763 = vcmp.eq.f32.partialorder %v1760, %v1762
        %v1764 = vsel %vm1763, %v1759, inf
        %1765 = vmin.xlane.f32.xlu0 %v1764
        %v1766 = vpop.xlane.xlu0 %1765
        %v1767 = vcvt.f32.s32 %v1766
        %v1768 = vcvt.f32.s32 %v1762
        %v1769 = vshll.u32 %v1768, 16
        %v1770 = vadd.s32 %v1769, %v1767
        %v1771 = vand.u32 %v1545, 63
        %v1772 = vand.u32 %v1560, 63
        %v1773 = vand.u32 %v1575, 63
        %v1774 = vand.u32 %v1590, 63
        %v1775 = vand.u32 %v1605, 63
        %v1776 = vand.u32 %v1620, 63
        %v1777 = vand.u32 %v1635, 63
        %v1778 = vand.u32 %v1650, 63
        %v1779 = vand.u32 %v1665, 63
        %v1780 = vand.u32 %v1680, 63
        %v1781 = vand.u32 %v1695, 63
        %v1782 = vand.u32 %v1710, 63
        %v1783 = vand.u32 %v1725, 63
        %v1784 = vand.u32 %v1740, 63
        %v1785 = vand.u32 %v1755, 63
        %v1786 = vand.u32 %v1770, 63
        %vm1787 = vcmp.eq.s32.totalorder %v873, %v1771
        %vm1788 = vcmp.eq.s32.totalorder %v873, %v1772
        %vm1789 = vcmp.eq.s32.totalorder %v873, %v1773
        %vm1790 = vcmp.eq.s32.totalorder %v873, %v1774
        %vm1791 = vcmp.eq.s32.totalorder %v873, %v1775
        %vm1792 = vcmp.eq.s32.totalorder %v873, %v1776
        %vm1793 = vcmp.eq.s32.totalorder %v873, %v1777
        %vm1794 = vcmp.eq.s32.totalorder %v873, %v1778
        %vm1795 = vcmp.eq.s32.totalorder %v873, %v1779
        %vm1796 = vcmp.eq.s32.totalorder %v873, %v1780
        %vm1797 = vcmp.eq.s32.totalorder %v873, %v1781
        %vm1798 = vcmp.eq.s32.totalorder %v873, %v1782
        %vm1799 = vcmp.eq.s32.totalorder %v873, %v1783
        %vm1800 = vcmp.eq.s32.totalorder %v873, %v1784
        %vm1801 = vcmp.eq.s32.totalorder %v873, %v1785
        %vm1802 = vcmp.eq.s32.totalorder %v873, %v1786
        %v1803 = vsel %vm1787, 1.0, %v1499
        %v1804 = vsel %vm1788, 1.0, %v1500
        %v1805 = vsel %vm1789, 1.0, %v1501
        %v1806 = vsel %vm1790, 1.0, %v1502
        %v1807 = vsel %vm1791, 1.0, %v1503
        %v1808 = vsel %vm1792, 1.0, %v1504
        %v1809 = vsel %vm1793, 1.0, %v1505
        %v1810 = vsel %vm1794, 1.0, %v1506
        %v1811 = vsel %vm1795, 1.0, %v1507
        %v1812 = vsel %vm1796, 1.0, %v1508
        %v1813 = vsel %vm1797, 1.0, %v1509
        %v1814 = vsel %vm1798, 1.0, %v1510
        %v1815 = vsel %vm1799, 1.0, %v1511
        %v1816 = vsel %vm1800, 1.0, %v1512
        %v1817 = vsel %vm1801, 1.0, %v1513
        %v1818 = vsel %vm1802, 1.0, %v1514
        %v1819 = vmax.f32 %v856, 1e-16
        %v1820 = vmax.f32 %v857, 1e-16
        %v1821 = vmax.f32 %v858, 1e-16
        %v1822 = vmax.f32 %v859, 1e-16
        %v1823 = vmax.f32 %v860, 1e-16
        %v1824 = vmax.f32 %v861, 1e-16
        %v1825 = vmax.f32 %v862, 1e-16
        %v1826 = vmax.f32 %v863, 1e-16
        %v1827 = vmax.f32 %v864, 1e-16
        %v1828 = vmax.f32 %v865, 1e-16
        %v1829 = vmax.f32 %v866, 1e-16
        %v1830 = vmax.f32 %v867, 1e-16
        %v1831 = vmax.f32 %v868, 1e-16
        %v1832 = vmax.f32 %v869, 1e-16
        %v1833 = vmax.f32 %v870, 1e-16
        %v1834 = vmax.f32 %v871, 1e-16
        %v1835 = vrcp.pop %v1819
        %v1836 = vrcp.pop %v1820
        %v1837 = vrcp.pop %v1821
        %v1838 = vrcp.pop %v1822
        %v1839 = vrcp.pop %v1823
        %v1840 = vrcp.pop %v1824
        %v1841 = vrcp.pop %v1825
        %v1842 = vrcp.pop %v1826
        %v1843 = vrcp.pop %v1827
        %v1844 = vrcp.pop %v1828
        %v1845 = vrcp.pop %v1829
        %v1846 = vrcp.pop %v1830
        %v1847 = vrcp.pop %v1831
        %v1848 = vrcp.pop %v1832
        %v1849 = vrcp.pop %v1833
        %v1850 = vrcp.pop %v1834
        %v1851 = vmul.f32 %v1803, %v1835
        %v1852 = vmul.f32 %v1804, %v1836
        %v1853 = vmul.f32 %v1805, %v1837
        %v1854 = vmul.f32 %v1806, %v1838
        %v1855 = vmul.f32 %v1807, %v1839
        %v1856 = vmul.f32 %v1808, %v1840
        %v1857 = vmul.f32 %v1809, %v1841
        %v1858 = vmul.f32 %v1810, %v1842
        %v1859 = vmul.f32 %v1811, %v1843
        %v1860 = vmul.f32 %v1812, %v1844
        %v1861 = vmul.f32 %v1813, %v1845
        %v1862 = vmul.f32 %v1814, %v1846
        %v1863 = vmul.f32 %v1815, %v1847
        %v1864 = vmul.f32 %v1816, %v1848
        %v1865 = vmul.f32 %v1817, %v1849
        %v1866 = vmul.f32 %v1818, %v1850
        %v1867 = vld [vmem:[%s5] sm:$0xff]
        %v1868 = vld [vmem:[%s5 + $0x8] sm:$0xff]
        %v1869 = vld [vmem:[%s5 + $0x10] sm:$0xff]
        %v1870 = vld [vmem:[%s5 + $0x18] sm:$0xff]
        %v1871 = vld [vmem:[%s5 + $0x20] sm:$0xff]
        %v1872 = vld [vmem:[%s5 + $0x28] sm:$0xff]
        %v1873 = vld [vmem:[%s5 + $0x30] sm:$0xff]
        %v1874 = vld [vmem:[%s5 + $0x38] sm:$0xff]
        %v1876 = vsel %vm922, %v1851, 0
        %v1879 = vsel %vm922, %v1852, 0
        %v1882 = vsel %vm922, %v1853, 0
        %v1885 = vsel %vm922, %v1854, 0
        %v1888 = vsel %vm922, %v1855, 0
        %v1891 = vsel %vm922, %v1856, 0
        %v1894 = vsel %vm922, %v1857, 0
        %v1897 = vsel %vm922, %v1858, 0
        %v1900 = vsel %vm922, %v1859, 0
        %v1903 = vsel %vm922, %v1860, 0
        %v1906 = vsel %vm922, %v1861, 0
        %v1909 = vsel %vm922, %v1862, 0
        %v1912 = vsel %vm922, %v1863, 0
        %v1915 = vsel %vm922, %v1864, 0
        %v1918 = vsel %vm922, %v1865, 0
        %v1921 = vsel %vm922, %v1866, 0
        %1923 = vmatprep.subr.mxu0 0.0
        %1924 = vmatpush1.msra.mxu0 %v1867
        %1925 = vmatprep.subr.mxu0 0.0
        %1926 = vmatpush1.msra.mxu0 %v1868
        %1927 = vmatprep.subr.mxu0 0.0
        %1928 = vmatpush1.msra.mxu0 %v1869
        %1929 = vmatprep.subr.mxu0 0.0
        %1930 = vmatpush1.msra.mxu0 %v1870
        %1931 = vmatprep.subr.mxu0 0.0
        %1932 = vmatpush1.msra.mxu0 %v1871
        %1933 = vmatprep.subr.mxu0 0.0
        %1934 = vmatpush1.msra.mxu0 %v1872
        %1935 = vmatprep.subr.mxu0 0.0
        %1936 = vmatpush1.msra.mxu0 %v1873
        %1937 = vmatprep.subr.mxu0 0.0
        %1938 = vmatpush1.msra.mxu0 %v1874
        %1939 = vmatprep.subr.mxu0 0.0
        %1940 = vmatpush1.msra.mxu0 0.0
        %1941 = vmatprep.subr.mxu0 0.0
        %1942 = vmatpush1.msra.mxu0 0.0
        %1943 = vmatprep.subr.mxu0 0.0
        %1944 = vmatpush1.msra.mxu0 0.0
        %1945 = vmatprep.subr.mxu0 0.0
        %1946 = vmatpush1.msra.mxu0 0.0
        %1947 = vmatprep.subr.mxu0 0.0
        %1948 = vmatpush1.msra.mxu0 0.0
        %1949 = vmatprep.subr.mxu0 0.0
        %1950 = vmatpush1.msra.mxu0 0.0
        %1951 = vmatprep.subr.mxu0 0.0
        %1952 = vmatpush1.msra.mxu0 0.0
        %1953 = vmatprep.subr.mxu0 0.0
        %1954 = vmatpush1.msra.mxu0 0.0
        %1955 = vmatprep.subr.mxu0 0.0
        %1956 = vmatpush1.msra.mxu0 0.0
        %1957 = vmatprep.subr.mxu0 0.0
        %1958 = vmatpush1.msra.mxu0 0.0
        %1959 = vmatprep.subr.mxu0 0.0
        %1960 = vmatpush1.msra.mxu0 0.0
        %1961 = vmatprep.subr.mxu0 0.0
        %1962 = vmatpush1.msra.mxu0 0.0
        %1963 = vmatprep.subr.mxu0 0.0
        %1964 = vmatpush1.msra.mxu0 0.0
        %1965 = vmatprep.subr.mxu0 0.0
        %1966 = vmatpush1.msra.mxu0 0.0
        %1967 = vmatprep.subr.mxu0 0.0
        %1968 = vmatpush1.msra.mxu0 0.0
        %1969 = vmatprep.subr.mxu0 0.0
        %1970 = vmatpush1.msra.mxu0 0.0
        %1971 = vmatprep.subr.mxu0 0.0
        %1972 = vmatpush1.msra.mxu0 0.0
        %1973 = vmatprep.subr.mxu0 0.0
        %1974 = vmatpush1.msra.mxu0 0.0
        %1975 = vmatprep.subr.mxu0 0.0
        %1976 = vmatpush1.msra.mxu0 0.0
        %1977 = vmatprep.subr.mxu0 0.0
        %1978 = vmatpush1.msra.mxu0 0.0
        %1979 = vmatprep.subr.mxu0 0.0
        %1980 = vmatpush1.msra.mxu0 0.0
        %1981 = vmatprep.subr.mxu0 0.0
        %1982 = vmatpush1.msra.mxu0 0.0
        %1983 = vmatprep.subr.mxu0 0.0
        %1984 = vmatpush1.msra.mxu0 0.0
        %1985 = vmatprep.subr.mxu0 0.0
        %1986 = vmatpush1.msra.mxu0 0.0
        %1987 = vmatprep.mubr.f32.mxu0 0.0
        %1988 = vmatmul.mubr.f32.gmra.mrb[0].mxu0 %v1876
        %v1989 = vpop.f32.mrb[0].mxu0
        %v1990 = vadd.f32 0.0, %v1989
        %v1991 = vpop.f32.mrb[0].mxu0
        %1992 = vmatprep.mubr.f32.mxu0 0.0
        %1993 = vmatmul.mubr.f32.gmra.mrb[0].mxu0 %v1879
        %v1994 = vpop.f32.mrb[0].mxu0
        %v1995 = vadd.f32 0.0, %v1994
        %v1996 = vpop.f32.mrb[0].mxu0
        %1997 = vmatprep.mubr.f32.mxu0 0.0
        %1998 = vmatmul.mubr.f32.gmra.mrb[0].mxu0 %v1882
        %v1999 = vpop.f32.mrb[0].mxu0
        %v2000 = vadd.f32 0.0, %v1999
        %v2001 = vpop.f32.mrb[0].mxu0
        %2002 = vmatprep.mubr.f32.mxu0 0.0
        %2003 = vmatmul.mubr.f32.gmra.mrb[0].mxu0 %v1885
        %v2004 = vpop.f32.mrb[0].mxu0
        %v2005 = vadd.f32 0.0, %v2004
        %v2006 = vpop.f32.mrb[0].mxu0
        %2007 = vmatprep.mubr.f32.mxu0 0.0
        %2008 = vmatmul.mubr.f32.gmra.mrb[0].mxu0 %v1888
        %v2009 = vpop.f32.mrb[0].mxu0
        %v2010 = vadd.f32 0.0, %v2009
        %v2011 = vpop.f32.mrb[0].mxu0
        %2012 = vmatprep.mubr.f32.mxu0 0.0
        %2013 = vmatmul.mubr.f32.gmra.mrb[0].mxu0 %v1891
        %v2014 = vpop.f32.mrb[0].mxu0
        %v2015 = vadd.f32 0.0, %v2014
        %v2016 = vpop.f32.mrb[0].mxu0
        %2017 = vmatprep.mubr.f32.mxu0 0.0
        %2018 = vmatmul.mubr.f32.gmra.mrb[0].mxu0 %v1894
        %v2019 = vpop.f32.mrb[0].mxu0
        %v2020 = vadd.f32 0.0, %v2019
        %v2021 = vpop.f32.mrb[0].mxu0
        %2022 = vmatprep.mubr.f32.mxu0 0.0
        %2023 = vmatmul.mubr.f32.gmra.mrb[0].mxu0 %v1897
        %v2024 = vpop.f32.mrb[0].mxu0
        %v2025 = vadd.f32 0.0, %v2024
        %v2026 = vpop.f32.mrb[0].mxu0
        %2027 = vmatprep.mubr.f32.mxu0 0.0
        %2028 = vmatmul.mubr.f32.gmra.mrb[0].mxu0 %v1900
        %v2029 = vpop.f32.mrb[0].mxu0
        %v2030 = vadd.f32 0.0, %v2029
        %v2031 = vpop.f32.mrb[0].mxu0
        %2032 = vmatprep.mubr.f32.mxu0 0.0
        %2033 = vmatmul.mubr.f32.gmra.mrb[0].mxu0 %v1903
        %v2034 = vpop.f32.mrb[0].mxu0
        %v2035 = vadd.f32 0.0, %v2034
        %v2036 = vpop.f32.mrb[0].mxu0
        %2037 = vmatprep.mubr.f32.mxu0 0.0
        %2038 = vmatmul.mubr.f32.gmra.mrb[0].mxu0 %v1906
        %v2039 = vpop.f32.mrb[0].mxu0
        %v2040 = vadd.f32 0.0, %v2039
        %v2041 = vpop.f32.mrb[0].mxu0
        %2042 = vmatprep.mubr.f32.mxu0 0.0
        %2043 = vmatmul.mubr.f32.gmra.mrb[0].mxu0 %v1909
        %v2044 = vpop.f32.mrb[0].mxu0
        %v2045 = vadd.f32 0.0, %v2044
        %v2046 = vpop.f32.mrb[0].mxu0
        %2047 = vmatprep.mubr.f32.mxu0 0.0
        %2048 = vmatmul.mubr.f32.gmra.mrb[0].mxu0 %v1912
        %v2049 = vpop.f32.mrb[0].mxu0
        %v2050 = vadd.f32 0.0, %v2049
        %v2051 = vpop.f32.mrb[0].mxu0
        %2052 = vmatprep.mubr.f32.mxu0 0.0
        %2053 = vmatmul.mubr.f32.gmra.mrb[0].mxu0 %v1915
        %v2054 = vpop.f32.mrb[0].mxu0
        %v2055 = vadd.f32 0.0, %v2054
        %v2056 = vpop.f32.mrb[0].mxu0
        %2057 = vmatprep.mubr.f32.mxu0 0.0
        %2058 = vmatmul.mubr.f32.gmra.mrb[0].mxu0 %v1918
        %v2059 = vpop.f32.mrb[0].mxu0
        %v2060 = vadd.f32 0.0, %v2059
        %v2061 = vpop.f32.mrb[0].mxu0
        %2062 = vmatprep.mubr.f32.mxu0 0.0
        %2063 = vmatmul.mubr.f32.gmra.mrb[0].mxu0 %v1921
        %v2064 = vpop.f32.mrb[0].mxu0
        %v2065 = vadd.f32 0.0, %v2064
        %v2066 = vpop.f32.mrb[0].mxu0
        %2067 = vdwg.mxu0
        %v2068 = vrcp.pop %v1990
        %v2069 = vrcp.pop %v1995
        %v2070 = vrcp.pop %v2000
        %v2071 = vrcp.pop %v2005
        %v2072 = vrcp.pop %v2010
        %v2073 = vrcp.pop %v2015
        %v2074 = vrcp.pop %v2020
        %v2075 = vrcp.pop %v2025
        %v2076 = vrcp.pop %v2030
        %v2077 = vrcp.pop %v2035
        %v2078 = vrcp.pop %v2040
        %v2079 = vrcp.pop %v2045
        %v2080 = vrcp.pop %v2050
        %v2081 = vrcp.pop %v2055
        %v2082 = vrcp.pop %v2060
        %v2083 = vrcp.pop %v2065
        %2085 = vset.pattern.permute.xlu0 32
        %2086 = vperm.xlu0 %2085, %v2068
        %v2087 = vpop.permute.xlu0 %2086
        %2090 = vset.pattern.permute.xlu0 32
        %2091 = vperm.xlu0 %2090, %v2069
        %v2092 = vpop.permute.xlu0 %2091
        %2095 = vset.pattern.permute.xlu0 32
        %2096 = vperm.xlu0 %2095, %v2070
        %v2097 = vpop.permute.xlu0 %2096
        %2100 = vset.pattern.permute.xlu0 32
        %2101 = vperm.xlu0 %2100, %v2071
        %v2102 = vpop.permute.xlu0 %2101
        %2105 = vset.pattern.permute.xlu0 32
        %2106 = vperm.xlu0 %2105, %v2072
        %v2107 = vpop.permute.xlu0 %2106
        %2110 = vset.pattern.permute.xlu0 32
        %2111 = vperm.xlu0 %2110, %v2073
        %v2112 = vpop.permute.xlu0 %2111
        %2115 = vset.pattern.permute.xlu0 32
        %2116 = vperm.xlu0 %2115, %v2074
        %v2117 = vpop.permute.xlu0 %2116
        %2120 = vset.pattern.permute.xlu0 32
        %2121 = vperm.xlu0 %2120, %v2075
        %v2122 = vpop.permute.xlu0 %2121
        %2125 = vset.pattern.permute.xlu0 32
        %2126 = vperm.xlu0 %2125, %v2076
        %v2127 = vpop.permute.xlu0 %2126
        %2130 = vset.pattern.permute.xlu0 32
        %2131 = vperm.xlu0 %2130, %v2077
        %v2132 = vpop.permute.xlu0 %2131
        %2135 = vset.pattern.permute.xlu0 32
        %2136 = vperm.xlu0 %2135, %v2078
        %v2137 = vpop.permute.xlu0 %2136
        %2140 = vset.pattern.permute.xlu0 32
        %2141 = vperm.xlu0 %2140, %v2079
        %v2142 = vpop.permute.xlu0 %2141
        %2145 = vset.pattern.permute.xlu0 32
        %2146 = vperm.xlu0 %2145, %v2080
        %v2147 = vpop.permute.xlu0 %2146
        %2150 = vset.pattern.permute.xlu0 32
        %2151 = vperm.xlu0 %2150, %v2081
        %v2152 = vpop.permute.xlu0 %2151
        %2155 = vset.pattern.permute.xlu0 32
        %2156 = vperm.xlu0 %2155, %v2082
        %v2157 = vpop.permute.xlu0 %2156
        %2160 = vset.pattern.permute.xlu0 32
        %2161 = vperm.xlu0 %2160, %v2083
        %v2162 = vpop.permute.xlu0 %2161
        %v2164 = vmul.f32 %v1990, %v2087
        %v2165 = vmul.f32 %v1995, %v2092
        %v2166 = vmul.f32 %v2000, %v2097
        %v2167 = vmul.f32 %v2005, %v2102
        %v2168 = vmul.f32 %v2010, %v2107
        %v2169 = vmul.f32 %v2015, %v2112
        %v2170 = vmul.f32 %v2020, %v2117
        %v2171 = vmul.f32 %v2025, %v2122
        %v2172 = vmul.f32 %v2030, %v2127
        %v2173 = vmul.f32 %v2035, %v2132
        %v2174 = vmul.f32 %v2040, %v2137
        %v2175 = vmul.f32 %v2045, %v2142
        %v2176 = vmul.f32 %v2050, %v2147
        %v2177 = vmul.f32 %v2055, %v2152
        %v2178 = vmul.f32 %v2060, %v2157
        %v2179 = vmul.f32 %v2065, %v2162
        %v2180 = vpack.c.bf16 %v2165, %v2164
        %v2181 = vpack.c.bf16 %v2167, %v2166
        %v2182 = vpack.c.bf16 %v2169, %v2168
        %v2183 = vpack.c.bf16 %v2171, %v2170
        %v2184 = vpack.c.bf16 %v2173, %v2172
        %v2185 = vpack.c.bf16 %v2175, %v2174
        %v2186 = vpack.c.bf16 %v2177, %v2176
        %v2187 = vpack.c.bf16 %v2179, %v2178
        %v2188 = vld [vmem:[%s6] sm:$0xf]
        %v2189 = vld [vmem:[%s6 + $0x4] sm:$0xf]
        %v2190 = vld [vmem:[%s6 + $0x8] sm:$0xf]
        %v2191 = vld [vmem:[%s6 + $0xc] sm:$0xf]
        %v2192 = vld [vmem:[%s402] sm:$0xf]
        %v2193 = vld [vmem:[%s402 + $0x4] sm:$0xf]
        %v2194 = vld [vmem:[%s402 + $0x8] sm:$0xf]
        %v2195 = vld [vmem:[%s402 + $0xc] sm:$0xf]
        %v2196 = vld [vmem:[%s402 + $0x10] sm:$0xf]
        %v2197 = vld [vmem:[%s402 + $0x14] sm:$0xf]
        %v2198 = vld [vmem:[%s402 + $0x18] sm:$0xf]
        %v2199 = vld [vmem:[%s402 + $0x1c] sm:$0xf]
        %v2200 = vld [vmem:[%s402 + $0x20] sm:$0xf]
        %v2201 = vld [vmem:[%s402 + $0x24] sm:$0xf]
        %v2202 = vld [vmem:[%s402 + $0x28] sm:$0xf]
        %v2203 = vld [vmem:[%s402 + $0x2c] sm:$0xf]
        %v2204 = vld [vmem:[%s402 + $0x30] sm:$0xf]
        %v2205 = vld [vmem:[%s402 + $0x34] sm:$0xf]
        %v2206 = vld [vmem:[%s402 + $0x38] sm:$0xf]
        %v2207 = vld [vmem:[%s402 + $0x3c] sm:$0xf]
        %v2208 = vld [vmem:[%s7] sm:$0xf]
        %v2209 = vld [vmem:[%s7 + $0x4] sm:$0xf]
        %v2226 = vunpack.c.l.b16 %v2192
        %v2227 = vunpack.c.l.b16 %v2193
        %v2228 = vunpack.c.l.b16 %v2194
        %v2229 = vunpack.c.l.b16 %v2195
        %v2230 = vunpack.c.l.b16 %v2196
        %v2231 = vunpack.c.l.b16 %v2197
        %v2232 = vunpack.c.l.b16 %v2198
        %v2233 = vunpack.c.l.b16 %v2199
        %v2234 = vunpack.c.l.b16 %v2200
        %v2235 = vunpack.c.l.b16 %v2201
        %v2236 = vunpack.c.l.b16 %v2202
        %v2237 = vunpack.c.l.b16 %v2203
        %v2238 = vunpack.c.l.b16 %v2204
        %v2239 = vunpack.c.l.b16 %v2205
        %v2240 = vunpack.c.l.b16 %v2206
        %v2241 = vunpack.c.l.b16 %v2207
        %v2242 = vpack.c.b16 %v2227, %v2226
        %v2243 = vpack.c.b16 %v2229, %v2228
        %v2244 = vpack.c.b16 %v2231, %v2230
        %v2245 = vpack.c.b16 %v2233, %v2232
        %v2246 = vpack.c.b16 %v2235, %v2234
        %v2247 = vpack.c.b16 %v2237, %v2236
        %v2248 = vpack.c.b16 %v2239, %v2238
        %v2249 = vpack.c.b16 %v2241, %v2240
        %v2252 = vunpack.c.l.b16 %v2208
        %v2253 = vunpack.c.l.b16 %v2209
        %v2254 = vpack.c.b16 %v2253, %v2252
        %vm2256 = vcmask 130048
        %v2258 = vsel %vm2256, %v2242, 0
        %v2261 = vsel %vm2256, %v2243, 0
        %v2264 = vsel %vm2256, %v2244, 0
        %v2267 = vsel %vm2256, %v2245, 0
        %v2270 = vsel %vm2256, %v2246, 0
        %v2273 = vsel %vm2256, %v2247, 0
        %v2276 = vsel %vm2256, %v2248, 0
        %v2279 = vsel %vm2256, %v2249, 0
        %2281 = vmatprep.subr.bf16.mxu0 0
        %2282 = vmatpush1.bf16.msra.mxu0 %v2254
        %2283 = vmatprep.subr.bf16.mxu0 0
        %2284 = vmatpush1.bf16.msra.mxu0 0
        %2285 = vmatprep.subr.bf16.mxu0 0
        %2286 = vmatpush1.bf16.msra.mxu0 0
        %2287 = vmatprep.subr.bf16.mxu0 0
        %2288 = vmatpush1.bf16.msra.mxu0 0
        %2289 = vmatprep.subr.bf16.mxu0 0
        %2290 = vmatpush1.bf16.msra.mxu0 0
        %2291 = vmatprep.subr.bf16.mxu0 0
        %2292 = vmatpush1.bf16.msra.mxu0 0
        %2293 = vmatprep.subr.bf16.mxu0 0
        %2294 = vmatpush1.bf16.msra.mxu0 0
        %2295 = vmatprep.subr.bf16.mxu0 0
        %2296 = vmatpush1.bf16.msra.mxu0 0
        %2297 = vmatprep.subr.bf16.mxu0 0
        %2298 = vmatpush1.bf16.msra.mxu0 0
        %2299 = vmatprep.subr.bf16.mxu0 0
        %2300 = vmatpush1.bf16.msra.mxu0 0
        %2301 = vmatprep.subr.bf16.mxu0 0
        %2302 = vmatpush1.bf16.msra.mxu0 0
        %2303 = vmatprep.subr.bf16.mxu0 0
        %2304 = vmatpush1.bf16.msra.mxu0 0
        %2305 = vmatprep.subr.bf16.mxu0 0
        %2306 = vmatpush1.bf16.msra.mxu0 0
        %2307 = vmatprep.subr.bf16.mxu0 0
        %2308 = vmatpush1.bf16.msra.mxu0 0
        %2309 = vmatprep.subr.bf16.mxu0 0
        %2310 = vmatpush1.bf16.msra.mxu0 0
        %2311 = vmatprep.subr.bf16.mxu0 0
        %2312 = vmatpush1.bf16.msra.mxu0 0
        %2313 = vmatprep.mubr.bf16.mxu0 0
        %2314 = vmatmul.mubr.bf16.gmra.mrb[0].mxu0 %v2258
        %v2315 = vpop.f32.mrb[0].mxu0
        %v2316 = vadd.f32 0.0, %v2315
        %v2317 = vpop.f32.mrb[0].mxu0
        %v2318 = vpop.f32.mrb[0].mxu0
        %v2319 = vadd.f32 0.0, %v2318
        %v2320 = vpop.f32.mrb[0].mxu0
        %2321 = vmatprep.mubr.bf16.mxu0 0
        %2322 = vmatmul.mubr.bf16.gmra.mrb[0].mxu0 %v2261
        %v2323 = vpop.f32.mrb[0].mxu0
        %v2324 = vadd.f32 0.0, %v2323
        %v2325 = vpop.f32.mrb[0].mxu0
        %v2326 = vpop.f32.mrb[0].mxu0
        %v2327 = vadd.f32 0.0, %v2326
        %v2328 = vpop.f32.mrb[0].mxu0
        %2329 = vmatprep.mubr.bf16.mxu0 0
        %2330 = vmatmul.mubr.bf16.gmra.mrb[0].mxu0 %v2264
        %v2331 = vpop.f32.mrb[0].mxu0
        %v2332 = vadd.f32 0.0, %v2331
        %v2333 = vpop.f32.mrb[0].mxu0
        %v2334 = vpop.f32.mrb[0].mxu0
        %v2335 = vadd.f32 0.0, %v2334
        %v2336 = vpop.f32.mrb[0].mxu0
        %2337 = vmatprep.mubr.bf16.mxu0 0
        %2338 = vmatmul.mubr.bf16.gmra.mrb[0].mxu0 %v2267
        %v2339 = vpop.f32.mrb[0].mxu0
        %v2340 = vadd.f32 0.0, %v2339
        %v2341 = vpop.f32.mrb[0].mxu0
        %v2342 = vpop.f32.mrb[0].mxu0
        %v2343 = vadd.f32 0.0, %v2342
        %v2344 = vpop.f32.mrb[0].mxu0
        %2345 = vmatprep.mubr.bf16.mxu0 0
        %2346 = vmatmul.mubr.bf16.gmra.mrb[0].mxu0 %v2270
        %v2347 = vpop.f32.mrb[0].mxu0
        %v2348 = vadd.f32 0.0, %v2347
        %v2349 = vpop.f32.mrb[0].mxu0
        %v2350 = vpop.f32.mrb[0].mxu0
        %v2351 = vadd.f32 0.0, %v2350
        %v2352 = vpop.f32.mrb[0].mxu0
        %2353 = vmatprep.mubr.bf16.mxu0 0
        %2354 = vmatmul.mubr.bf16.gmra.mrb[0].mxu0 %v2273
        %v2355 = vpop.f32.mrb[0].mxu0
        %v2356 = vadd.f32 0.0, %v2355
        %v2357 = vpop.f32.mrb[0].mxu0
        %v2358 = vpop.f32.mrb[0].mxu0
        %v2359 = vadd.f32 0.0, %v2358
        %v2360 = vpop.f32.mrb[0].mxu0
        %2361 = vmatprep.mubr.bf16.mxu0 0
        %2362 = vmatmul.mubr.bf16.gmra.mrb[0].mxu0 %v2276
        %v2363 = vpop.f32.mrb[0].mxu0
        %v2364 = vadd.f32 0.0, %v2363
        %v2365 = vpop.f32.mrb[0].mxu0
        %v2366 = vpop.f32.mrb[0].mxu0
        %v2367 = vadd.f32 0.0, %v2366
        %v2368 = vpop.f32.mrb[0].mxu0
        %2369 = vmatprep.mubr.bf16.mxu0 0
        %2370 = vmatmul.mubr.bf16.gmra.mrb[0].mxu0 %v2279
        %v2371 = vpop.f32.mrb[0].mxu0
        %v2372 = vadd.f32 0.0, %v2371
        %v2373 = vpop.f32.mrb[0].mxu0
        %v2374 = vpop.f32.mrb[0].mxu0
        %v2375 = vadd.f32 0.0, %v2374
        %v2376 = vpop.f32.mrb[0].mxu0
        %2377 = vdwg.mxu0
        %v2382 = vunpack.c.l.b16 %v2188
        %v2383 = vunpack.c.l.b16 %v2189
        %v2384 = vunpack.c.l.b16 %v2190
        %v2385 = vunpack.c.l.b16 %v2191
        %v2386 = vpack.c.b16 %v2383, %v2382
        %v2387 = vpack.c.b16 %v2385, %v2384
        %vm2390 = vcmask 261120
        %v2392 = vsel %vm2390, %v2180, 0
        %v2395 = vsel %vm2390, %v2181, 0
        %v2398 = vsel %vm2390, %v2182, 0
        %v2401 = vsel %vm2390, %v2183, 0
        %v2404 = vsel %vm2390, %v2184, 0
        %v2407 = vsel %vm2390, %v2185, 0
        %v2410 = vsel %vm2390, %v2186, 0
        %v2413 = vsel %vm2390, %v2187, 0
        %2415 = vmatprep.subr.bf16.mxu0 0
        %2416 = vmatpush1.bf16.msra.mxu0 %v2386
        %2417 = vmatprep.subr.bf16.mxu0 0
        %2418 = vmatpush1.bf16.msra.mxu0 %v2387
        %2419 = vmatprep.subr.bf16.mxu0 0
        %2420 = vmatpush1.bf16.msra.mxu0 0
        %2421 = vmatprep.subr.bf16.mxu0 0
        %2422 = vmatpush1.bf16.msra.mxu0 0
        %2423 = vmatprep.subr.bf16.mxu0 0
        %2424 = vmatpush1.bf16.msra.mxu0 0
        %2425 = vmatprep.subr.bf16.mxu0 0
        %2426 = vmatpush1.bf16.msra.mxu0 0
        %2427 = vmatprep.subr.bf16.mxu0 0
        %2428 = vmatpush1.bf16.msra.mxu0 0
        %2429 = vmatprep.subr.bf16.mxu0 0
        %2430 = vmatpush1.bf16.msra.mxu0 0
        %2431 = vmatprep.subr.bf16.mxu0 0
        %2432 = vmatpush1.bf16.msra.mxu0 0
        %2433 = vmatprep.subr.bf16.mxu0 0
        %2434 = vmatpush1.bf16.msra.mxu0 0
        %2435 = vmatprep.subr.bf16.mxu0 0
        %2436 = vmatpush1.bf16.msra.mxu0 0
        %2437 = vmatprep.subr.bf16.mxu0 0
        %2438 = vmatpush1.bf16.msra.mxu0 0
        %2439 = vmatprep.subr.bf16.mxu0 0
        %2440 = vmatpush1.bf16.msra.mxu0 0
        %2441 = vmatprep.subr.bf16.mxu0 0
        %2442 = vmatpush1.bf16.msra.mxu0 0
        %2443 = vmatprep.subr.bf16.mxu0 0
        %2444 = vmatpush1.bf16.msra.mxu0 0
        %2445 = vmatprep.subr.bf16.mxu0 0
        %2446 = vmatpush1.bf16.msra.mxu0 0
        %2447 = vmatprep.mubr.bf16.mxu0 0
        %2448 = vmatmul.mubr.bf16.gmra.mrb[0].mxu0 %v2392
        %v2449 = vpop.f32.mrb[0].mxu0
        %v2450 = vadd.f32 %v2316, %v2449
        %v2451 = vpop.f32.mrb[0].mxu0
        %v2452 = vpop.f32.mrb[0].mxu0
        %v2453 = vadd.f32 %v2319, %v2452
        %v2454 = vpop.f32.mrb[0].mxu0
        %2455 = vmatprep.mubr.bf16.mxu0 0
        %2456 = vmatmul.mubr.bf16.gmra.mrb[0].mxu0 %v2395
        %v2457 = vpop.f32.mrb[0].mxu0
        %v2458 = vadd.f32 %v2324, %v2457
        %v2459 = vpop.f32.mrb[0].mxu0
        %v2460 = vpop.f32.mrb[0].mxu0
        %v2461 = vadd.f32 %v2327, %v2460
        %v2462 = vpop.f32.mrb[0].mxu0
        %2463 = vmatprep.mubr.bf16.mxu0 0
        %2464 = vmatmul.mubr.bf16.gmra.mrb[0].mxu0 %v2398
        %v2465 = vpop.f32.mrb[0].mxu0
        %v2466 = vadd.f32 %v2332, %v2465
        %v2467 = vpop.f32.mrb[0].mxu0
        %v2468 = vpop.f32.mrb[0].mxu0
        %v2469 = vadd.f32 %v2335, %v2468
        %v2470 = vpop.f32.mrb[0].mxu0
        %2471 = vmatprep.mubr.bf16.mxu0 0
        %2472 = vmatmul.mubr.bf16.gmra.mrb[0].mxu0 %v2401
        %v2473 = vpop.f32.mrb[0].mxu0
        %v2474 = vadd.f32 %v2340, %v2473
        %v2475 = vpop.f32.mrb[0].mxu0
        %v2476 = vpop.f32.mrb[0].mxu0
        %v2477 = vadd.f32 %v2343, %v2476
        %v2478 = vpop.f32.mrb[0].mxu0
        %2479 = vmatprep.mubr.bf16.mxu0 0
        %2480 = vmatmul.mubr.bf16.gmra.mrb[0].mxu0 %v2404
        %v2481 = vpop.f32.mrb[0].mxu0
        %v2482 = vadd.f32 %v2348, %v2481
        %v2483 = vpop.f32.mrb[0].mxu0
        %v2484 = vpop.f32.mrb[0].mxu0
        %v2485 = vadd.f32 %v2351, %v2484
        %v2486 = vpop.f32.mrb[0].mxu0
        %2487 = vmatprep.mubr.bf16.mxu0 0
        %2488 = vmatmul.mubr.bf16.gmra.mrb[0].mxu0 %v2407
        %v2489 = vpop.f32.mrb[0].mxu0
        %v2490 = vadd.f32 %v2356, %v2489
        %v2491 = vpop.f32.mrb[0].mxu0
        %v2492 = vpop.f32.mrb[0].mxu0
        %v2493 = vadd.f32 %v2359, %v2492
        %v2494 = vpop.f32.mrb[0].mxu0
        %2495 = vmatprep.mubr.bf16.mxu0 0
        %2496 = vmatmul.mubr.bf16.gmra.mrb[0].mxu0 %v2410
        %v2497 = vpop.f32.mrb[0].mxu0
        %v2498 = vadd.f32 %v2364, %v2497
        %v2499 = vpop.f32.mrb[0].mxu0
        %v2500 = vpop.f32.mrb[0].mxu0
        %v2501 = vadd.f32 %v2367, %v2500
        %v2502 = vpop.f32.mrb[0].mxu0
        %2503 = vmatprep.mubr.bf16.mxu0 0
        %2504 = vmatmul.mubr.bf16.gmra.mrb[0].mxu0 %v2413
        %v2505 = vpop.f32.mrb[0].mxu0
        %v2506 = vadd.f32 %v2372, %v2505
        %v2507 = vpop.f32.mrb[0].mxu0
        %v2508 = vpop.f32.mrb[0].mxu0
        %v2509 = vadd.f32 %v2375, %v2508
        %v2510 = vpop.f32.mrb[0].mxu0
        %2511 = vdwg.mxu0
        %v2512 = vld [vmem:[%s8] sm:$0x1]
        %v2514 = vlaneseq
        %v2515 = vshrl.u32 %v2514, 7
        %v2516 = vsub.s32 0, %v2515
        %v2517 = vrot.slane %v2512, %v2516
        %v2519 = vadd.f32 %v2450, %v2517
        %v2520 = vadd.f32 %v2453, %v2517
        %v2521 = vadd.f32 %v2458, %v2517
        %v2522 = vadd.f32 %v2461, %v2517
        %v2523 = vadd.f32 %v2466, %v2517
        %v2524 = vadd.f32 %v2469, %v2517
        %v2525 = vadd.f32 %v2474, %v2517
        %v2526 = vadd.f32 %v2477, %v2517
        %v2527 = vadd.f32 %v2482, %v2517
        %v2528 = vadd.f32 %v2485, %v2517
        %v2529 = vadd.f32 %v2490, %v2517
        %v2530 = vadd.f32 %v2493, %v2517
        %v2531 = vadd.f32 %v2498, %v2517
        %v2532 = vadd.f32 %v2501, %v2517
        %v2533 = vadd.f32 %v2506, %v2517
        %v2534 = vadd.f32 %v2509, %v2517
        %v2535 = vmax.f32 %v2519, 0.0
        %v2536 = vmax.f32 %v2520, 0.0
        %v2537 = vmax.f32 %v2521, 0.0
        %v2538 = vmax.f32 %v2522, 0.0
        %v2539 = vmax.f32 %v2523, 0.0
        %v2540 = vmax.f32 %v2524, 0.0
        %v2541 = vmax.f32 %v2525, 0.0
        %v2542 = vmax.f32 %v2526, 0.0
        %v2543 = vmax.f32 %v2527, 0.0
        %v2544 = vmax.f32 %v2528, 0.0
        %v2545 = vmax.f32 %v2529, 0.0
        %v2546 = vmax.f32 %v2530, 0.0
        %v2547 = vmax.f32 %v2531, 0.0
        %v2548 = vmax.f32 %v2532, 0.0
        %v2549 = vmax.f32 %v2533, 0.0
        %v2550 = vmax.f32 %v2534, 0.0
        %v2551 = vld [vmem:[%s9] sm:$0x1]
        %v2553 = vlaneseq
        %v2554 = vshrl.u32 %v2553, 7
        %v2555 = vsub.s32 0, %v2554
        %v2556 = vrot.slane %v2551, %v2555
        %v2558 = vadd.f32 %v2535, %v2556
        %v2559 = vadd.f32 %v2536, %v2556
        %v2560 = vadd.f32 %v2537, %v2556
        %v2561 = vadd.f32 %v2538, %v2556
        %v2562 = vadd.f32 %v2539, %v2556
        %v2563 = vadd.f32 %v2540, %v2556
        %v2564 = vadd.f32 %v2541, %v2556
        %v2565 = vadd.f32 %v2542, %v2556
        %v2566 = vadd.f32 %v2543, %v2556
        %v2567 = vadd.f32 %v2544, %v2556
        %v2568 = vadd.f32 %v2545, %v2556
        %v2569 = vadd.f32 %v2546, %v2556
        %v2570 = vadd.f32 %v2547, %v2556
        %v2571 = vadd.f32 %v2548, %v2556
        %v2572 = vadd.f32 %v2549, %v2556
        %v2573 = vadd.f32 %v2550, %v2556
        %2574 = vst [vmem:[%s385] sm:$0xff] %v2558
        %2575 = vst [vmem:[%s385 + $0x8] sm:$0xff] %v2559
        %2576 = vst [vmem:[%s385 + $0x10] sm:$0xff] %v2560
        %2577 = vst [vmem:[%s385 + $0x18] sm:$0xff] %v2561
        %2578 = vst [vmem:[%s385 + $0x20] sm:$0xff] %v2562
        %2579 = vst [vmem:[%s385 + $0x28] sm:$0xff] %v2563
        %2580 = vst [vmem:[%s385 + $0x30] sm:$0xff] %v2564
        %2581 = vst [vmem:[%s385 + $0x38] sm:$0xff] %v2565
        %2582 = vst [vmem:[%s385 + $0x40] sm:$0xff] %v2566
        %2583 = vst [vmem:[%s385 + $0x48] sm:$0xff] %v2567
        %2584 = vst [vmem:[%s385 + $0x50] sm:$0xff] %v2568
        %2585 = vst [vmem:[%s385 + $0x58] sm:$0xff] %v2569
        %2586 = vst [vmem:[%s385 + $0x60] sm:$0xff] %v2570
        %2587 = vst [vmem:[%s385 + $0x68] sm:$0xff] %v2571
        %2588 = vst [vmem:[%s385 + $0x70] sm:$0xff] %v2572
        %2589 = vst [vmem:[%s385 + $0x78] sm:$0xff] %v2573
        %s2590 = sand.u32 %s257, 1
        %s2591 = scalar_lea.sflag [#allocation3], %s2590
        %s2592 = sand.u32 %s257, 1
        %s2593 = smul.addr %s2592, 128
        %s2594 = scalar_lea.vmem [#allocation2], %s2593
        // Predicated region
        $region61: #{tpu_custom_call.1} parent=59 // pred_check
          %p2595 = pneg %p267
        $region62: #{tpu_custom_call.1} parent=59 // pred_check_branch
          %2597 = sbr.rel (%p2595) target = $region64
        $region63: #{tpu_custom_call.1} parent=59 // pred_region
          %s2598 = smul.u32 16, %s24
          %s2600 = ssub.s32 2048, 2048
          %2601 = vsyncadd %s2591, %s2600
          %s2602 = smul.addr %s2598, 128
          %s2603 = scalar_lea.hbm %s10, %s2602
          %s2604 = sshll.u32 %s2594, 4
          %s2605 = int_to_ptr.vmem [resolvable:$true] %s2604
          %2610 = dma.vmem_to_hbm [thread:$0]  %s2605, 2048, %s2603, %s2591, 128, 128, 8
        $region64: #{tpu_custom_call.1} parent=59 // pred_fallthru
          _
      $region60: #{tpu_custom_call.1} parent=5 // pred_fallthru
        _
      %p2611 = scmp.le.s32.totalorder 2, %s19
      // Predicated region
      $region65: #{tpu_custom_call.1} parent=5 // pred_check
        %p2612 = pneg %p2611
      $region66: #{tpu_custom_call.1} parent=5 // pred_check_branch
        %2614 = sbr.rel (%p2612) target = $region68
      $region67: #{tpu_custom_call.1} parent=5 // pred_region
        %s2615 = ssub.s32 %s19, 2
        // Predicated region
        $region69: #{tpu_custom_call.1} parent=67 // pred_check
          %p2616 = pneg %p273
        $region70: #{tpu_custom_call.1} parent=67 // pred_check_branch
          %2618 = sbr.rel (%p2616) target = $region72
        $region71: #{tpu_custom_call.1} parent=67 // pred_region
          %s2619 = sand.u32 %s258, 1
          %s2620 = scalar_lea.sflag [#allocation3], %s2619
          %s2621 = sand.u32 %s258, 1
          %s2622 = smul.addr %s2621, 128
          %s2623 = scalar_lea.vmem [#allocation2], %s2622
          %2624 = dma.done %s2620, 2048
        $region72: #{tpu_custom_call.1} parent=67 // pred_fallthru
          _
      $region68: #{tpu_custom_call.1} parent=5 // pred_fallthru
        _
    $region6: #{tpu_custom_call.1} parent=1 // loop_footer
      %s23 = sadd.s32 1, %s19
    $region7: #{tpu_custom_call.1} parent=1 // loop_footer_branch
      %18 = sbr.rel target = $region3
    $region8: #{tpu_custom_call.1} parent=1 // loop_exit
      _
    %2625 = vsyncpa [#allocation3], 1
    %s2626 = scalar_lea.sflag [#allocation3], 1
    %2627 = vsyncpa %s2626, 1

</llo_original>
